<compile_context>
chip_gen: v7x
topology: tpu7x:2x2x1
jax: 0.10.0
libtpu: 0.0.40
codegen_flags: <defaults>
</compile_context>

<pallas_src>
import jax
import jax.numpy as jnp
from jax.experimental import pallas as pl
from jax.experimental.pallas import tpu as pltpu


def _round_up(v, m):
    return ((v + m - 1) // m) * m


def _vmem_capacity_bytes():
    """Per-core VMEM capacity; conservative fallback = 64 MiB (v7x per-TC)."""
    try:
        info = pltpu.get_tpu_info()
        cap = getattr(info, "vmem_capacity_bytes", None)
        if cap:
            return int(cap)
    except Exception:
        pass
    return 64 * 1024 * 1024


def _make_kernel(d_pad, vpu_proj):
    """Kernel for static (d_pad, vpu_proj) configuration (always-fused path)."""

    def kernel(x_ref, wab_ref, bab_ref, wc_ref, bc_ref, out_ref):
        x = x_ref[...]                                              # (TN, L)
        # Single fused (L, 2*D_pad) matmul, f32 accumulation on the MXU.
        # (Default MXU precision; pass f32 weights if PyTorch-f32 parity is
        #  needed, tolerances below cover the bf16-pass difference.)
        ab = jnp.dot(x, wab_ref[...], preferred_element_type=jnp.float32)
        ab = ab + bab_ref[...].astype(jnp.float32)                  # (TN, 2*D_pad)
        a = jnp.tanh(ab[:, :d_pad])                                 # (TN, D_pad)
        # sigmoid(z) == 0.5*(tanh(z/2)+1): one EUP push instead of exp+divide.
        b = 0.5 * (jnp.tanh(0.5 * ab[:, d_pad:]) + 1.0)             # (TN, D_pad)
        gated = a * b
        bc = bc_ref[...].astype(jnp.float32)
        if vpu_proj:
            # n_tasks == 1: lane-broadcast multiply + cross-lane reduce (XLU)
            # beats a 1-column MXU matmul.
            scores = jnp.sum(gated * wc_ref[...].astype(jnp.float32),
                             axis=-1, keepdims=True) + bc
        else:
            scores = jnp.dot(gated, wc_ref[...],
                             preferred_element_type=jnp.float32) + bc
        out_ref[...] = scores.astype(out_ref.dtype)

    return kernel


def attn_net_gated(x, wa, ba, wb, bb, wc, bc, *,
                   block_n=None, vmem_limit_bytes=None, out_dtype=None):
    """Returns (A, x) exactly like the PyTorch module.

    x:  (N, L)
    wa: (L, D), ba: (1, D)   attention_a Linear (weights pre-transposed)
    wb: (L, D), bb: (1, D)   attention_b Linear
    wc: (D, T), bc: (1, T)   attention_c Linear
    block_n / vmem_limit_bytes default to generation-aware values.
    out_dtype defaults to x.dtype (pass jnp.float32 for f32 scores from bf16).
    """
    N, L = x.shape
    D = wa.shape[1]
    T = wc.shape[1]
    out_dtype = x.dtype if out_dtype is None else out_dtype

    # ---- Pad D up to a lane tile so the fused single-matmul path is always
    #      taken and the in-kernel activation slices stay lane-aligned.
    #      Padded gate columns evaluate to exactly 0 and wc's padded rows are
    #      0, so the result is unchanged. ----
    d_pad = _round_up(D, 128)
    if d_pad != D:
        pad_c = ((0, 0), (0, d_pad - D))
        wa = jnp.pad(wa, pad_c)
        wb = jnp.pad(wb, pad_c)
        ba = jnp.pad(ba, pad_c)
        bb = jnp.pad(bb, pad_c)
        wc = jnp.pad(wc, ((0, d_pad - D), (0, 0)))

    w_ab = jnp.concatenate([wa, wb], axis=1)          # (L, 2*d_pad)
    b_ab = jnp.concatenate([ba, bb], axis=1)          # (1, 2*d_pad)

    vpu_proj = (T == 1)
    wc_k = wc.T if vpu_proj else wc                   # (1, d_pad) or (d_pad, T)

    # ---- Generation-aware VMEM budget and N-tile size. ----
    cap = _vmem_capacity_bytes()
    if vmem_limit_bytes is None:
        vmem_limit_bytes = min(int(0.80 * cap), 112 * 1024 * 1024)
    if block_n is None:
        budget = int(0.55 * cap)
        w_bytes = (w_ab.size + b_ab.size + wc_k.size + bc.size) \
            * w_ab.dtype.itemsize
        per_row = 2 * (L + T) * x.dtype.itemsize       # double-buffered x/out
        per_row += 4 * 3 * d_pad                        # f32 ab + gated temps
        block_n = max(256, (budget - w_bytes) // per_row)
        block_n = min(int(block_n), 4096)

    tn = _round_up(max(8, min(block_n, N)), 8)
    # Keep >= 2 grid steps on large inputs so v7x's two TensorCores both work.
    if N > 1024 and pl.cdiv(N, tn) < 2:
        tn = _round_up(pl.cdiv(N, 2), 8)

    # No x padding: partial last block is handled by the clamped DMA; tail
    # rows are independent and never written back.  (Do not add cross-row
    # reductions inside the kernel without re-introducing masking.)
    grid = (pl.cdiv(N, tn),)

    row = lambda i: (i, 0)        # x / output walk the N tiles
    const = lambda i: (0, 0)      # weights / biases stay VMEM-resident
    kernel = _make_kernel(d_pad, vpu_proj)

    def run(single_buffer_weights):
        kw = {}
        if single_buffer_weights and hasattr(pl, "Buffered"):
            kw = dict(pipeline_mode=pl.Buffered(1))   # fetched once; no 2nd buf
        in_specs = [
            pl.BlockSpec((tn, L), row),
            pl.BlockSpec((L, 2 * d_pad), const, **kw),
            pl.BlockSpec((1, 2 * d_pad), const, **kw),
            pl.BlockSpec(wc_k.shape, const, **kw),
            pl.BlockSpec((1, T), const, **kw),
        ]
        return pl.pallas_call(
            kernel,
            out_shape=jax.ShapeDtypeStruct((N, T), out_dtype),
            grid=grid,
            in_specs=in_specs,
            out_specs=pl.BlockSpec((tn, T), row),
            compiler_params=pltpu.CompilerParams(
                dimension_semantics=("parallel",),
                vmem_limit_bytes=int(vmem_limit_bytes)),
        )(x, w_ab, b_ab, wc_k, bc)

    try:
        A = run(True)      # single-buffered constant weight/bias blocks
    except Exception:
        A = run(False)     # fall back if this build rejects pipeline_mode
    return A, x


def _reference(x, wa, ba, wb, bb, wc, bc):
    hp = jax.lax.Precision.HIGHEST
    xf = x.astype(jnp.float32)
    a = jnp.tanh(jnp.dot(xf, wa.astype(jnp.float32), precision=hp)
                 + ba.astype(jnp.float32))
    b = jax.nn.sigmoid(jnp.dot(xf, wb.astype(jnp.float32), precision=hp)
                       + bb.astype(jnp.float32))
    return (jnp.dot(a * b, wc.astype(jnp.float32), precision=hp)
            + bc.astype(jnp.float32))


if __name__ == "__main__":
    key = jax.random.PRNGKey(0)
    kx, kwa, kba, kwb, kbb, kwc, kbc = jax.random.split(key, 7)

    # --- Test 1: unaligned D (96 -> padded to 128), T=1 VPU projection,
    #     multi-tile cdiv grid with a partial tail block (300 = 2*128 + 44).
    N, L, D, T = 300, 128, 96, 1
    x = jax.random.normal(kx, (N, L), dtype=jnp.float32)
    wa = jax.random.normal(kwa, (L, D), dtype=jnp.float32) * 0.05
    ba = jax.random.normal(kba, (1, D), dtype=jnp.float32) * 0.05
    wb = jax.random.normal(kwb, (L, D), dtype=jnp.float32) * 0.05
    bb = jax.random.normal(kbb, (1, D), dtype=jnp.float32) * 0.05
    wc = jax.random.normal(kwc, (D, T), dtype=jnp.float32) * 0.05
    bc = jax.random.normal(kbc, (1, T), dtype=jnp.float32) * 0.05

    A, x_out = attn_net_gated(x, wa, ba, wb, bb, wc, bc, block_n=128)
    jax.block_until_ready((A, x_out))
    A_ref = _reference(x, wa, ba, wb, bb, wc, bc)
    assert A.shape == (N, T)
    assert x_out.shape == (N, L)
    assert jnp.allclose(A, A_ref, atol=5e-3, rtol=5e-3), "f32 mismatch vs reference"
    assert jnp.array_equal(x_out, x), "passthrough x mismatch"

    # --- Test 2: bf16 inputs/weights (half HBM traffic, bf16 MXU peak; the
    #     recommended default on v5e), f32 accumulation inside the kernel.
    bf = lambda t: t.astype(jnp.bfloat16)
    A16, _ = attn_net_gated(bf(x), bf(wa), bf(ba), bf(wb), bf(bb),
                            bf(wc), bf(bc), block_n=128)
    jax.block_until_ready(A16)
    assert A16.dtype == jnp.bfloat16
    assert jnp.allclose(A16.astype(jnp.float32), A_ref, atol=5e-2, rtol=5e-2), \
        "bf16 mismatch vs f32 reference"

    # --- Test 3: tiny unaligned shapes, multi-task T=4 -> MXU projection,
    #     single partially-out-of-bounds tile (N=10, tn rounds to 16),
    #     auto block_n / vmem sizing.
    N3, L3, D3, T3 = 10, 32, 16, 4
    x3 = jax.random.normal(kx, (N3, L3), dtype=jnp.float32)
    wa3 = jax.random.normal(kwa, (L3, D3), dtype=jnp.float32) * 0.05
    ba3 = jax.random.normal(kba, (1, D3), dtype=jnp.float32) * 0.05
    wb3 = jax.random.normal(kwb, (L3, D3), dtype=jnp.float32) * 0.05
    bb3 = jax.random.normal(kbb, (1, D3), dtype=jnp.float32) * 0.05
    wc3 = jax.random.normal(kwc, (D3, T3), dtype=jnp.float32) * 0.05
    bc3 = jax.random.normal(kbc, (1, T3), dtype=jnp.float32) * 0.05

    A3, x3_out = attn_net_gated(x3, wa3, ba3, wb3, bb3, wc3, bc3)
    jax.block_until_ready((A3, x3_out))
    A3_ref = _reference(x3, wa3, ba3, wb3, bb3, wc3, bc3)
    assert A3.shape == (N3, T3)
    assert jnp.allclose(A3, A3_ref, atol=5e-3, rtol=5e-3), "multi-task mismatch"
    assert jnp.array_equal(x3_out, x3), "passthrough x mismatch"

    print("KERNEL_OK")
</pallas_src>

<mosaic_0001>
module attributes {stable_mosaic.version = 11 : i64} {
  func.func @kernel(%arg0: i32, %arg1: memref<128x128xf32, #tpu.memory_space<vmem>>, %arg2: memref<128x256xf32, #tpu.memory_space<vmem>>, %arg3: memref<1x256xf32, #tpu.memory_space<vmem>>, %arg4: memref<1x128xf32, #tpu.memory_space<vmem>>, %arg5: memref<1x1xf32, #tpu.memory_space<vmem>>, %arg6: memref<128x1xf32, #tpu.memory_space<vmem>>) attributes {dimension_semantics = [#tpu.dimension_semantics<parallel>], iteration_bounds = array<i64: 3>, scalar_prefetch = 0 : i64, scratch_operands = 0 : i64, tpu.core_type = #tpu.core_type<tc>, window_params = [{transform_indices = @transform_0, window_bounds = array<i64: 128, 128>}, {pipeline_mode = #tpu.pipeline_mode<synchronous>, transform_indices = @transform_1, window_bounds = array<i64: 128, 256>}, {pipeline_mode = #tpu.pipeline_mode<synchronous>, transform_indices = @transform_2, window_bounds = array<i64: 1, 256>}, {pipeline_mode = #tpu.pipeline_mode<synchronous>, transform_indices = @transform_3, window_bounds = array<i64: 1, 128>}, {pipeline_mode = #tpu.pipeline_mode<synchronous>, transform_indices = @transform_4, window_bounds = array<i64: 1, 1>}, {transform_indices = @transform_5, window_bounds = array<i64: 128, 1>}]} {
    %c0 = arith.constant 0 : index
    %c0_0 = arith.constant 0 : index
    %0 = vector.load %arg1[%c0, %c0_0] : memref<128x128xf32, #tpu.memory_space<vmem>>, vector<128x128xf32>
    %c0_1 = arith.constant 0 : index
    %c0_2 = arith.constant 0 : index
    %1 = vector.load %arg2[%c0_1, %c0_2] : memref<128x256xf32, #tpu.memory_space<vmem>>, vector<128x256xf32>
    %cst = arith.constant dense<0.000000e+00> : vector<128x256xf32>
    %2 = tpu.matmul %0, %1, %cst {dimension_numbers = #tpu.dot_dimension_numbers<[1], [0], [0], [1], [0, 0, 1, 1], [], []>} : vector<128x128xf32>, vector<128x256xf32>, vector<128x256xf32> -> vector<128x256xf32>
    %c0_3 = arith.constant 0 : index
    %c0_4 = arith.constant 0 : index
    %3 = vector.load %arg3[%c0_3, %c0_4] : memref<1x256xf32, #tpu.memory_space<vmem>>, vector<1x256xf32>
    %4 = vector.broadcast %3 : vector<1x256xf32> to vector<128x256xf32>
    %5 = arith.addf %2, %4 : vector<128x256xf32>
    %6 = vector.extract_strided_slice %5 {offsets = [0, 0], sizes = [128, 128], strides = [1, 1]} : vector<128x256xf32> to vector<128x128xf32>
    %7 = math.tanh %6 : vector<128x128xf32>
    %8 = vector.extract_strided_slice %5 {offsets = [0, 128], sizes = [128, 128], strides = [1, 1]} : vector<128x256xf32> to vector<128x128xf32>
    %cst_5 = arith.constant 5.000000e-01 : f32
    %9 = vector.broadcast %cst_5 : f32 to vector<128x128xf32>
    %10 = arith.mulf %9, %8 : vector<128x128xf32>
    %11 = math.tanh %10 : vector<128x128xf32>
    %cst_6 = arith.constant 1.000000e+00 : f32
    %12 = vector.broadcast %cst_6 : f32 to vector<128x128xf32>
    %13 = arith.addf %11, %12 : vector<128x128xf32>
    %cst_7 = arith.constant 5.000000e-01 : f32
    %14 = vector.broadcast %cst_7 : f32 to vector<128x128xf32>
    %15 = arith.mulf %14, %13 : vector<128x128xf32>
    %16 = arith.mulf %7, %15 : vector<128x128xf32>
    %c0_8 = arith.constant 0 : index
    %c0_9 = arith.constant 0 : index
    %17 = vector.load %arg5[%c0_8, %c0_9] : memref<1x1xf32, #tpu.memory_space<vmem>>, vector<1x1xf32>
    %c0_10 = arith.constant 0 : index
    %c0_11 = arith.constant 0 : index
    %18 = vector.load %arg4[%c0_10, %c0_11] : memref<1x128xf32, #tpu.memory_space<vmem>>, vector<1x128xf32>
    %19 = vector.broadcast %18 : vector<1x128xf32> to vector<128x128xf32>
    %20 = arith.mulf %16, %19 : vector<128x128xf32>
    %cst_12 = arith.constant dense<0.000000e+00> : vector<128xf32>
    %21 = vector.multi_reduction <add>, %20, %cst_12 [1] : vector<128x128xf32> to vector<128xf32>
    %22 = vector.shape_cast %21 : vector<128xf32> to vector<128x1xf32>
    %23 = vector.broadcast %17 : vector<1x1xf32> to vector<128x1xf32>
    %24 = arith.addf %22, %23 : vector<128x1xf32>
    %c0_13 = arith.constant 0 : index
    %c0_14 = arith.constant 0 : index
    %25 = vector.load %arg6[%c0_13, %c0_14] : memref<128x1xf32, #tpu.memory_space<vmem>>, vector<128x1xf32>
    tpu.vector_store %arg6[%c0_13, %c0_14], %24 {strides = array<i32>} : memref<128x1xf32, #tpu.memory_space<vmem>>, vector<128x1xf32>,
    return
  }
  func.func @transform_0(%arg0: i32) -> (i32, i32) {
    %c0_i32 = arith.constant 0 : i32
    %c0_i32_0 = arith.constant 0 : i32
    return %arg0, %c0_i32 : i32, i32
  }
  func.func @transform_1(%arg0: i32) -> (i32, i32) {
    %c0_i32 = arith.constant 0 : i32
    %c0_i32_0 = arith.constant 0 : i32
    %c0_i32_1 = arith.constant 0 : i32
    return %c0_i32, %c0_i32_0 : i32, i32
  }
  func.func @transform_2(%arg0: i32) -> (i32, i32) {
    %c0_i32 = arith.constant 0 : i32
    %c0_i32_0 = arith.constant 0 : i32
    %c0_i32_1 = arith.constant 0 : i32
    return %c0_i32, %c0_i32_0 : i32, i32
  }
  func.func @transform_3(%arg0: i32) -> (i32, i32) {
    %c0_i32 = arith.constant 0 : i32
    %c0_i32_0 = arith.constant 0 : i32
    %c0_i32_1 = arith.constant 0 : i32
    return %c0_i32, %c0_i32_0 : i32, i32
  }
  func.func @transform_4(%arg0: i32) -> (i32, i32) {
    %c0_i32 = arith.constant 0 : i32
    %c0_i32_0 = arith.constant 0 : i32
    %c0_i32_1 = arith.constant 0 : i32
    return %c0_i32, %c0_i32_0 : i32, i32
  }
  func.func @transform_5(%arg0: i32) -> (i32, i32) {
    %c0_i32 = arith.constant 0 : i32
    %c0_i32_0 = arith.constant 0 : i32
    return %arg0, %c0_i32 : i32, i32
  }
}

module attributes {stable_mosaic.version = 11 : i64} {
  func.func @kernel(%arg0: i32, %arg1: memref<128x128xf32, #tpu.memory_space<vmem>>, %arg2: memref<128x256xf32, #tpu.memory_space<vmem>>, %arg3: memref<1x256xf32, #tpu.memory_space<vmem>>, %arg4: memref<1x128xf32, #tpu.memory_space<vmem>>, %arg5: memref<1x1xf32, #tpu.memory_space<vmem>>, %arg6: memref<128x1xf32, #tpu.memory_space<vmem>>) attributes {dimension_semantics = [#tpu.dimension_semantics<parallel>], iteration_bounds = array<i64: 3>, scalar_prefetch = 0 : i64, scratch_operands = 0 : i64, tpu.core_type = #tpu.core_type<tc>, window_params = [{transform_indices = @transform_0, window_bounds = array<i64: 128, 128>}, {pipeline_mode = #tpu.pipeline_mode<synchronous>, transform_indices = @transform_1, window_bounds = array<i64: 128, 256>}, {pipeline_mode = #tpu.pipeline_mode<synchronous>, transform_indices = @transform_2, window_bounds = array<i64: 1, 256>}, {pipeline_mode = #tpu.pipeline_mode<synchronous>, transform_indices = @transform_3, window_bounds = array<i64: 1, 128>}, {pipeline_mode = #tpu.pipeline_mode<synchronous>, transform_indices = @transform_4, window_bounds = array<i64: 1, 1>}, {transform_indices = @transform_5, window_bounds = array<i64: 128, 1>}]} {
    %c0 = arith.constant 0 : index
    %c0_0 = arith.constant 0 : index
    %0 = vector.load %arg1[%c0, %c0_0] : memref<128x128xf32, #tpu.memory_space<vmem>>, vector<128x128xf32>
    %c0_1 = arith.constant 0 : index
    %c0_2 = arith.constant 0 : index
    %1 = vector.load %arg2[%c0_1, %c0_2] : memref<128x256xf32, #tpu.memory_space<vmem>>, vector<128x256xf32>
    %cst = arith.constant dense<0.000000e+00> : vector<128x256xf32>
    %2 = tpu.matmul %0, %1, %cst {dimension_numbers = #tpu.dot_dimension_numbers<[1], [0], [0], [1], [0, 0, 1, 1], [], []>} : vector<128x128xf32>, vector<128x256xf32>, vector<128x256xf32> -> vector<128x256xf32>
    %c0_3 = arith.constant 0 : index
    %c0_4 = arith.constant 0 : index
    %3 = vector.load %arg3[%c0_3, %c0_4] : memref<1x256xf32, #tpu.memory_space<vmem>>, vector<1x256xf32>
    %4 = vector.broadcast %3 : vector<1x256xf32> to vector<128x256xf32>
    %5 = arith.addf %2, %4 : vector<128x256xf32>
    %6 = vector.extract_strided_slice %5 {offsets = [0, 0], sizes = [128, 128], strides = [1, 1]} : vector<128x256xf32> to vector<128x128xf32>
    %7 = math.tanh %6 : vector<128x128xf32>
    %8 = vector.extract_strided_slice %5 {offsets = [0, 128], sizes = [128, 128], strides = [1, 1]} : vector<128x256xf32> to vector<128x128xf32>
    %cst_5 = arith.constant 5.000000e-01 : f32
    %9 = vector.broadcast %cst_5 : f32 to vector<128x128xf32>
    %10 = arith.mulf %9, %8 : vector<128x128xf32>
    %11 = math.tanh %10 : vector<128x128xf32>
    %cst_6 = arith.constant 1.000000e+00 : f32
    %12 = vector.broadcast %cst_6 : f32 to vector<128x128xf32>
    %13 = arith.addf %11, %12 : vector<128x128xf32>
    %cst_7 = arith.constant 5.000000e-01 : f32
    %14 = vector.broadcast %cst_7 : f32 to vector<128x128xf32>
    %15 = arith.mulf %14, %13 : vector<128x128xf32>
    %16 = arith.mulf %7, %15 : vector<128x128xf32>
    %c0_8 = arith.constant 0 : index
    %c0_9 = arith.constant 0 : index
    %17 = vector.load %arg5[%c0_8, %c0_9] : memref<1x1xf32, #tpu.memory_space<vmem>>, vector<1x1xf32>
    %c0_10 = arith.constant 0 : index
    %c0_11 = arith.constant 0 : index
    %18 = vector.load %arg4[%c0_10, %c0_11] : memref<1x128xf32, #tpu.memory_space<vmem>>, vector<1x128xf32>
    %19 = vector.broadcast %18 : vector<1x128xf32> to vector<128x128xf32>
    %20 = arith.mulf %16, %19 : vector<128x128xf32>
    %cst_12 = arith.constant dense<0.000000e+00> : vector<128xf32>
    %21 = vector.multi_reduction <add>, %20, %cst_12 [1] : vector<128x128xf32> to vector<128xf32>
    %22 = vector.shape_cast %21 : vector<128xf32> to vector<128x1xf32>
    %23 = vector.broadcast %17 : vector<1x1xf32> to vector<128x1xf32>
    %24 = arith.addf %22, %23 : vector<128x1xf32>
    %c0_13 = arith.constant 0 : index
    %c0_14 = arith.constant 0 : index
    %25 = vector.load %arg6[%c0_13, %c0_14] : memref<128x1xf32, #tpu.memory_space<vmem>>, vector<128x1xf32>
    tpu.vector_store %arg6[%c0_13, %c0_14], %24 {strides = array<i32>} : memref<128x1xf32, #tpu.memory_space<vmem>>, vector<128x1xf32>,
    return
  }
  func.func @transform_0(%arg0: i32) -> (i32, i32) {
    %c0_i32 = arith.constant 0 : i32
    %c0_i32_0 = arith.constant 0 : i32
    return %arg0, %c0_i32 : i32, i32
  }
  func.func @transform_1(%arg0: i32) -> (i32, i32) {
    %c0_i32 = arith.constant 0 : i32
    %c0_i32_0 = arith.constant 0 : i32
    %c0_i32_1 = arith.constant 0 : i32
    return %c0_i32, %c0_i32_0 : i32, i32
  }
  func.func @transform_2(%arg0: i32) -> (i32, i32) {
    %c0_i32 = arith.constant 0 : i32
    %c0_i32_0 = arith.constant 0 : i32
    %c0_i32_1 = arith.constant 0 : i32
    return %c0_i32, %c0_i32_0 : i32, i32
  }
  func.func @transform_3(%arg0: i32) -> (i32, i32) {
    %c0_i32 = arith.constant 0 : i32
    %c0_i32_0 = arith.constant 0 : i32
    %c0_i32_1 = arith.constant 0 : i32
    return %c0_i32, %c0_i32_0 : i32, i32
  }
  func.func @transform_4(%arg0: i32) -> (i32, i32) {
    %c0_i32 = arith.constant 0 : i32
    %c0_i32_0 = arith.constant 0 : i32
    %c0_i32_1 = arith.constant 0 : i32
    return %c0_i32, %c0_i32_0 : i32, i32
  }
  func.func @transform_5(%arg0: i32) -> (i32, i32) {
    %c0_i32 = arith.constant 0 : i32
    %c0_i32_0 = arith.constant 0 : i32
    return %arg0, %c0_i32 : i32, i32
  }
}

</mosaic_0001>

<llo_original>
// kernel: tpu_custom_call.1
$region0: #{tpu_custom_call.1}
  #allocation0 [shape = 'u32[]', space=smem, size = 0x4, offset = 0x4, fixed_abs, tag = 'smem constant byte address 0x4 - core index']
  #allocation1 [shape = 'u32[144,128]{1,0:T(1,128)}', space=vmem, size = 0x12000, scoped, tag = 'internal scratch']
  #allocation2 [shape = 'f32[1,1]{1,0:T(1,128)S(1)}', space=vmem, size = 0x200, scoped, tag = 'scoped memory for tpu_custom_call.1']
  %s0 = inlined_call_operand.hbm [shape: f32[300,128], index: 0, kind: input, shape index: {}]
  %s1 = inlined_call_operand.hbm [shape: f32[128,256], index: 1, kind: input, shape index: {}]
  %s2 = inlined_call_operand.vmem [shape: f32[1,256], index: 2, kind: input, shape index: {}]
  %s3 = inlined_call_operand.vmem [shape: f32[1,128], index: 3, kind: input, shape index: {}]
  %s4 = inlined_call_operand.<no memory space> [shape: f32[1,1], index: 4, kind: input, shape index: {}]
  %s5 = inlined_call_operand.vmem [shape: f32[300,1], index: 5, kind: output, shape index: {}]
  %s6 = sld [smem:[#allocation0]]
  $region109: #{tpu_custom_call.1} parent=0
    _
  %s8 = ssub.s32 1, %s6
  %s9 = scalar_select 0, %s8, %s6
  %v10 = vstv %s4
  %11 = vst [vmem:[#allocation2] sm:$0x1] %v10
  $region1: #{tpu_custom_call.1} parent=0
    #allocation3 [shape = 'u8[131072]{0}', space=vmem, size = 0x20000, scoped, tag = 'input window, operand 0']
    #allocation4 [shape = 's32[2]{0}', space=sflag, size = 0x8, scoped, tag = 'scoped memory for tpu_custom_call.1']
    #allocation5 [shape = 'u8[131072]{0}', space=vmem, size = 0x20000, scoped, tag = 'input window, operand 1, single buffered']
    #allocation6 [shape = 's32[1]{0}', space=sflag, size = 0x4, scoped, tag = 'scoped memory for tpu_custom_call.1']
    #allocation7 [shape = 'u8[131072]{0}', space=vmem, size = 0x20000, scoped, tag = 'output window, operand 0']
    %12 = vsyncpa [#allocation4], 0
    %s13 = scalar_lea.sflag [#allocation4], 1
    %14 = vsyncpa %s13, 0
    %15 = vsyncpa [#allocation6], 0
    loop: start=0, step=1, limit=5
    $region2: #{tpu_custom_call.1} parent=1 // loop_pre_header
      _
    $region3: #{tpu_custom_call.1} parent=1 // loop_header
      %s17 = sphi 0, %s21
      %p18 = scmp.ge.s32.totalorder %s17, 5
      %s27 = sphi 0, %s29
      %s30 = sphi 0, %s27
      %s31 = sphi 0, %s30
      %s47 = sphi 0, %s31
      %s51 = sphi 0, %s51
      %s53 = sphi 0, %s51
      %s54 = sphi 0, %s53
      %s68 = sphi 0, %s54
      %s72 = sphi 0, %s72
      %s74 = sphi 0, %s72
      %s75 = sphi 0, %s74
      %s89 = sphi 0, %s75
      %s93 = sphi 0, %s93
      %s95 = sphi 0, %s93
      %s96 = sphi 0, %s95
      %s110 = sphi 0, %s96
      %s114 = sphi 0, %s114
      %s116 = sphi 0, %s114
      %s117 = sphi 0, %s116
      %s131 = sphi 0, %s117
      %s137 = sphi 0, %s139
      %s140 = sphi 0, %s137
      %s141 = sphi 0, %s140
      %s157 = sphi 0, %s141
    $region4: #{tpu_custom_call.1} parent=1 // loop_header_branch
      %20 = sbr.rel (%p18) target = $region8
    $region5: #{tpu_custom_call.1} parent=1 // loop_body
      %s22 = ssub.s32 %s17, 1
      %s23 = ssub.s32 %s17, 2
      %s24 = sadd.s32 %s17, 1
      %s25 = ssub.s32 %s17, %s24
      %p26 = scmp.eq.s32.totalorder %s25, 0
      %s28 = sadd.s32 %s27, 1
      %s29 = scalar_select %p26, %s27, %s28
      %p32 = pneg %p26
      %p33 = scmp.eq.s32.totalorder %s17, 2
      %p34 = por %p32, %p33
      %p35 = scmp.ne.s32.totalorder %s27, %s30
      %p36 = scmp.eq.s32.totalorder %s17, 0
      %p37 = por %p35, %p36
      %p38 = scmp.ne.s32.totalorder %s27, %s30
      %p39 = scmp.eq.s32.totalorder %s22, 2
      %p40 = por %p38, %p39
      %p41 = scmp.ne.s32.totalorder %s30, %s31
      %p42 = scmp.eq.s32.totalorder %s22, 0
      %p43 = por %p41, %p42
      %p44 = scmp.ne.s32.totalorder %s30, %s31
      %p45 = scmp.eq.s32.totalorder %s23, 2
      %p46 = por %p44, %p45
      %p48 = scmp.ne.s32.totalorder %s31, %s47
      %p49 = scmp.eq.s32.totalorder %s23, 0
      %p50 = por %p48, %p49
      %s52 = sadd.s32 %s51, 1
      %p55 = scmp.eq.s32.totalorder %s17, 2
      %p56 = scmp.ne.s32.totalorder %s51, %s53
      %p57 = scmp.eq.s32.totalorder %s17, 0
      %p58 = por %p56, %p57
      %p59 = scmp.ne.s32.totalorder %s51, %s53
      %p60 = scmp.eq.s32.totalorder %s22, 2
      %p61 = por %p59, %p60
      %p62 = scmp.ne.s32.totalorder %s53, %s54
      %p63 = scmp.eq.s32.totalorder %s22, 0
      %p64 = por %p62, %p63
      %p65 = scmp.ne.s32.totalorder %s53, %s54
      %p66 = scmp.eq.s32.totalorder %s23, 2
      %p67 = por %p65, %p66
      %p69 = scmp.ne.s32.totalorder %s54, %s68
      %p70 = scmp.eq.s32.totalorder %s23, 0
      %p71 = por %p69, %p70
      %s73 = sadd.s32 %s72, 1
      %p76 = scmp.eq.s32.totalorder %s17, 2
      %p77 = scmp.ne.s32.totalorder %s72, %s74
      %p78 = scmp.eq.s32.totalorder %s17, 0
      %p79 = por %p77, %p78
      %p80 = scmp.ne.s32.totalorder %s72, %s74
      %p81 = scmp.eq.s32.totalorder %s22, 2
      %p82 = por %p80, %p81
      %p83 = scmp.ne.s32.totalorder %s74, %s75
      %p84 = scmp.eq.s32.totalorder %s22, 0
      %p85 = por %p83, %p84
      %p86 = scmp.ne.s32.totalorder %s74, %s75
      %p87 = scmp.eq.s32.totalorder %s23, 2
      %p88 = por %p86, %p87
      %p90 = scmp.ne.s32.totalorder %s75, %s89
      %p91 = scmp.eq.s32.totalorder %s23, 0
      %p92 = por %p90, %p91
      %s94 = sadd.s32 %s93, 1
      %p97 = scmp.eq.s32.totalorder %s17, 2
      %p98 = scmp.ne.s32.totalorder %s93, %s95
      %p99 = scmp.eq.s32.totalorder %s17, 0
      %p100 = por %p98, %p99
      %p101 = scmp.ne.s32.totalorder %s93, %s95
      %p102 = scmp.eq.s32.totalorder %s22, 2
      %p103 = por %p101, %p102
      %p104 = scmp.ne.s32.totalorder %s95, %s96
      %p105 = scmp.eq.s32.totalorder %s22, 0
      %p106 = por %p104, %p105
      %p107 = scmp.ne.s32.totalorder %s95, %s96
      %p108 = scmp.eq.s32.totalorder %s23, 2
      %p109 = por %p107, %p108
      %p111 = scmp.ne.s32.totalorder %s96, %s110
      %p112 = scmp.eq.s32.totalorder %s23, 0
      %p113 = por %p111, %p112
      %s115 = sadd.s32 %s114, 1
      %p118 = scmp.eq.s32.totalorder %s17, 2
      %p119 = scmp.ne.s32.totalorder %s114, %s116
      %p120 = scmp.eq.s32.totalorder %s17, 0
      %p121 = por %p119, %p120
      %p122 = scmp.ne.s32.totalorder %s114, %s116
      %p123 = scmp.eq.s32.totalorder %s22, 2
      %p124 = por %p122, %p123
      %p125 = scmp.ne.s32.totalorder %s116, %s117
      %p126 = scmp.eq.s32.totalorder %s22, 0
      %p127 = por %p125, %p126
      %p128 = scmp.ne.s32.totalorder %s116, %s117
      %p129 = scmp.eq.s32.totalorder %s23, 2
      %p130 = por %p128, %p129
      %p132 = scmp.ne.s32.totalorder %s117, %s131
      %p133 = scmp.eq.s32.totalorder %s23, 0
      %p134 = por %p132, %p133
      %s135 = ssub.s32 %s17, %s24
      %p136 = scmp.eq.s32.totalorder %s135, 0
      %s138 = sadd.s32 %s137, 1
      %s139 = scalar_select %p136, %s137, %s138
      %p142 = pneg %p136
      %p143 = scmp.eq.s32.totalorder %s17, 2
      %p144 = por %p142, %p143
      %p145 = scmp.ne.s32.totalorder %s137, %s140
      %p146 = scmp.eq.s32.totalorder %s17, 0
      %p147 = por %p145, %p146
      %p148 = scmp.ne.s32.totalorder %s137, %s140
      %p149 = scmp.eq.s32.totalorder %s22, 2
      %p150 = por %p148, %p149
      %p151 = scmp.ne.s32.totalorder %s140, %s141
      %p152 = scmp.eq.s32.totalorder %s22, 0
      %p153 = por %p151, %p152
      %p154 = scmp.ne.s32.totalorder %s140, %s141
      %p155 = scmp.eq.s32.totalorder %s23, 2
      %p156 = por %p154, %p155
      %p158 = scmp.ne.s32.totalorder %s141, %s157
      %p159 = scmp.eq.s32.totalorder %s23, 0
      %p160 = por %p158, %p159
      %p161 = scmp.le.s32.totalorder 1, %s17
      %p162 = scmp.lt.s32.totalorder %s17, 4
      %p163 = pnand %p161, %p162
      %p164 = pneg %p163
      // Predicated region
      $region9: #{tpu_custom_call.1} parent=5 // pred_check
        _
      $region10: #{tpu_custom_call.1} parent=5 // pred_check_branch
        %166 = sbr.rel (%p163) target = $region12
      $region11: #{tpu_custom_call.1} parent=5 // pred_region
        %s167 = ssub.s32 %s17, 1
        // Predicated region
        $region13: #{tpu_custom_call.1} parent=11 // pred_check
          %p168 = pneg %p64
        $region14: #{tpu_custom_call.1} parent=11 // pred_check_branch
          %170 = sbr.rel (%p168) target = $region16
        $region15: #{tpu_custom_call.1} parent=11 // pred_region
          %s172 = ssub.s32 4096, 4096
          %173 = vsyncadd [#allocation6], %s172
          %s174 = sshll.u32 [#allocation5], 4
          %s175 = int_to_ptr.vmem [resolvable:$true] %s174
          %180 = dma.hbm_to_vmem [thread:$0]  %s1, 4096, %s175, [#allocation6], 256, 256, 16
        $region16: #{tpu_custom_call.1} parent=11 // pred_fallthru
          _
        // Predicated region
        $region17: #{tpu_custom_call.1} parent=11 // pred_check
          %p181 = pneg %p85
        $region18: #{tpu_custom_call.1} parent=11 // pred_check_branch
          %183 = sbr.rel (%p181) target = $region20
        $region19: #{tpu_custom_call.1} parent=11 // pred_region
          _
        $region20: #{tpu_custom_call.1} parent=11 // pred_fallthru
          _
        // Predicated region
        $region21: #{tpu_custom_call.1} parent=11 // pred_check
          %p184 = pneg %p106
        $region22: #{tpu_custom_call.1} parent=11 // pred_check_branch
          %186 = sbr.rel (%p184) target = $region24
        $region23: #{tpu_custom_call.1} parent=11 // pred_region
          _
        $region24: #{tpu_custom_call.1} parent=11 // pred_fallthru
          _
        // Predicated region
        $region25: #{tpu_custom_call.1} parent=11 // pred_check
          %p187 = pneg %p127
        $region26: #{tpu_custom_call.1} parent=11 // pred_check_branch
          %189 = sbr.rel (%p187) target = $region28
        $region27: #{tpu_custom_call.1} parent=11 // pred_region
          _
        $region28: #{tpu_custom_call.1} parent=11 // pred_fallthru
          _
      $region12: #{tpu_custom_call.1} parent=5 // pred_fallthru
        _
      %p190 = scmp.lt.s32.totalorder %s17, 3
      // Predicated region
      $region29: #{tpu_custom_call.1} parent=5 // pred_check
        %p191 = pneg %p190
      $region30: #{tpu_custom_call.1} parent=5 // pred_check_branch
        %193 = sbr.rel (%p191) target = $region32
      $region31: #{tpu_custom_call.1} parent=5 // pred_region
        // Predicated region
        $region33: #{tpu_custom_call.1} parent=31 // pred_check
          %p194 = pneg %p37
        $region34: #{tpu_custom_call.1} parent=31 // pred_check_branch
          %196 = sbr.rel (%p194) target = $region36
        $region35: #{tpu_custom_call.1} parent=31 // pred_region
          %s197 = sand.u32 %s27, 1
          %s198 = scalar_lea.sflag [#allocation4], %s197
          %s199 = sand.u32 %s27, 1
          %s200 = smul.addr %s199, 128
          %s201 = scalar_lea.vmem [#allocation3], %s200
          %s202 = smul.u32 16, %s17
          %s203 = ssub.s32 38, %s202
          %p204 = scmp.lt.s32.totalorder %s203, 16
          %s205 = scalar_select %p204, %s203, 16
          %s206 = smul.u32 128, %s205
          %s208 = ssub.s32 2048, %s206
          %209 = vsyncadd %s198, %s208
          %p210 = scmp.ne.s32.totalorder 0, %s206
          %s211 = smul.addr %s202, 128
          %s212 = scalar_lea.hbm %s0, %s211
          %s213 = smul.u32 8, %s205
          %s214 = sshll.u32 %s201, 4
          %s215 = int_to_ptr.vmem [resolvable:$true] %s214
          %s216 = sshll.u32 %s213, 4
          %220 = dma.hbm_to_vmem [thread:$0]  (%p210), %s212, %s216, %s215, %s198, 128, 128, 8
        $region36: #{tpu_custom_call.1} parent=31 // pred_fallthru
          _
      $region32: #{tpu_custom_call.1} parent=5 // pred_fallthru
        _
      %p221 = scmp.le.s32.totalorder 1, %s17
      %p222 = scmp.lt.s32.totalorder %s17, 4
      %p223 = pnand %p221, %p222
      %p224 = pneg %p223
      // Predicated region
      $region37: #{tpu_custom_call.1} parent=5 // pred_check
        _
      $region38: #{tpu_custom_call.1} parent=5 // pred_check_branch
        %226 = sbr.rel (%p223) target = $region40
      $region39: #{tpu_custom_call.1} parent=5 // pred_region
        %s227 = ssub.s32 %s17, 1
        %s228 = sand.u32 %s30, 1
        %s229 = scalar_lea.sflag [#allocation4], %s228
        %s230 = sand.u32 %s30, 1
        %s231 = smul.addr %s230, 128
        %s232 = scalar_lea.vmem [#allocation3], %s231
        // Predicated region
        $region41: #{tpu_custom_call.1} parent=39 // pred_check
          %p233 = pneg %p43
        $region42: #{tpu_custom_call.1} parent=39 // pred_check_branch
          %235 = sbr.rel (%p233) target = $region44
        $region43: #{tpu_custom_call.1} parent=39 // pred_region
          %236 = dma.done %s229, 2048
        $region44: #{tpu_custom_call.1} parent=39 // pred_fallthru
          _
        // Predicated region
        $region45: #{tpu_custom_call.1} parent=39 // pred_check
          %p237 = pneg %p64
        $region46: #{tpu_custom_call.1} parent=39 // pred_check_branch
          %239 = sbr.rel (%p237) target = $region48
        $region47: #{tpu_custom_call.1} parent=39 // pred_region
          %240 = dma.done [#allocation6], 4096
        $region48: #{tpu_custom_call.1} parent=39 // pred_fallthru
          _
        %s241 = sand.u32 %s30, 1
        %s242 = scalar_lea.sflag [#allocation4], %s241
        %s243 = sand.u32 %s30, 1
        %s244 = smul.addr %s243, 128
        %s245 = scalar_lea.vmem [#allocation3], %s244
        %p246 = pneg %p43
        %p247 = pneg %p40
        %p248 = pneg %p64
        %p249 = pneg %p61
        %p250 = pneg %p85
        %p251 = pneg %p82
        %p252 = pneg %p106
        %p253 = pneg %p103
        %p254 = pneg %p127
        %p255 = pneg %p124
        %p256 = pneg %p153
        %p257 = pneg %p150
        %s258 = sand.u32 %s140, 1
        %s259 = sand.u32 %s140, 1
        %s260 = smul.addr %s259, 128
        %s261 = scalar_lea.vmem [#allocation7], %s260
        %s262 = smul.u32 16, %s22
        %s263 = ssub.s32 38, %s262
        %p264 = scmp.lt.s32.totalorder %s263, 16
        %s265 = scalar_select %p264, %s263, 16
        %s266 = smul.u32 128, %s265
        %s267 = smul.u32 16, %s22
        %s268 = ssub.s32 38, %s267
        %p269 = scmp.lt.s32.totalorder %s268, 16
        %s270 = scalar_select %p269, %s268, 16
        %s271 = smul.u32 128, %s270
        %v272 = vld [vmem:[%s232] sm:$0xff]
        %v273 = vld [vmem:[%s232 + $0x8] sm:$0xff]
        %v274 = vld [vmem:[%s232 + $0x10] sm:$0xff]
        %v275 = vld [vmem:[%s232 + $0x18] sm:$0xff]
        %v276 = vld [vmem:[%s232 + $0x20] sm:$0xff]
        %v277 = vld [vmem:[%s232 + $0x28] sm:$0xff]
        %v278 = vld [vmem:[%s232 + $0x30] sm:$0xff]
        %v279 = vld [vmem:[%s232 + $0x38] sm:$0xff]
        %v280 = vld [vmem:[%s232 + $0x40] sm:$0xff]
        %v281 = vld [vmem:[%s232 + $0x48] sm:$0xff]
        %v282 = vld [vmem:[%s232 + $0x50] sm:$0xff]
        %v283 = vld [vmem:[%s232 + $0x58] sm:$0xff]
        %v284 = vld [vmem:[%s232 + $0x60] sm:$0xff]
        %v285 = vld [vmem:[%s232 + $0x68] sm:$0xff]
        %v286 = vld [vmem:[%s232 + $0x70] sm:$0xff]
        %v287 = vld [vmem:[%s232 + $0x78] sm:$0xff]
        %v288 = vld [vmem:[#allocation5] sm:$0xff]
        %v289 = vld [vmem:[#allocation5 + $0x8] sm:$0xff]
        %v290 = vld [vmem:[#allocation5 + $0x10] sm:$0xff]
        %v291 = vld [vmem:[#allocation5 + $0x18] sm:$0xff]
        %v292 = vld [vmem:[#allocation5 + $0x20] sm:$0xff]
        %v293 = vld [vmem:[#allocation5 + $0x28] sm:$0xff]
        %v294 = vld [vmem:[#allocation5 + $0x30] sm:$0xff]
        %v295 = vld [vmem:[#allocation5 + $0x38] sm:$0xff]
        %v296 = vld [vmem:[#allocation5 + $0x40] sm:$0xff]
        %v297 = vld [vmem:[#allocation5 + $0x48] sm:$0xff]
        %v298 = vld [vmem:[#allocation5 + $0x50] sm:$0xff]
        %v299 = vld [vmem:[#allocation5 + $0x58] sm:$0xff]
        %v300 = vld [vmem:[#allocation5 + $0x60] sm:$0xff]
        %v301 = vld [vmem:[#allocation5 + $0x68] sm:$0xff]
        %v302 = vld [vmem:[#allocation5 + $0x70] sm:$0xff]
        %v303 = vld [vmem:[#allocation5 + $0x78] sm:$0xff]
        %v304 = vld [vmem:[#allocation5 + $0x80] sm:$0xff]
        %v305 = vld [vmem:[#allocation5 + $0x88] sm:$0xff]
        %v306 = vld [vmem:[#allocation5 + $0x90] sm:$0xff]
        %v307 = vld [vmem:[#allocation5 + $0x98] sm:$0xff]
        %v308 = vld [vmem:[#allocation5 + $0xa0] sm:$0xff]
        %v309 = vld [vmem:[#allocation5 + $0xa8] sm:$0xff]
        %v310 = vld [vmem:[#allocation5 + $0xb0] sm:$0xff]
        %v311 = vld [vmem:[#allocation5 + $0xb8] sm:$0xff]
        %v312 = vld [vmem:[#allocation5 + $0xc0] sm:$0xff]
        %v313 = vld [vmem:[#allocation5 + $0xc8] sm:$0xff]
        %v314 = vld [vmem:[#allocation5 + $0xd0] sm:$0xff]
        %v315 = vld [vmem:[#allocation5 + $0xd8] sm:$0xff]
        %v316 = vld [vmem:[#allocation5 + $0xe0] sm:$0xff]
        %v317 = vld [vmem:[#allocation5 + $0xe8] sm:$0xff]
        %v318 = vld [vmem:[#allocation5 + $0xf0] sm:$0xff]
        %v319 = vld [vmem:[#allocation5 + $0xf8] sm:$0xff]
        %v320 = vld [vmem:[%s2] sm:$0x3]
        %v322 = vlaneseq
        %v323 = vshrl.u32 %v322, 7
        %v324 = vsub.s32 0, %v323
        %v325 = vrot.slane %v320, %v324
        %v326 = vlaneseq
        %v327 = vshrl.u32 %v326, 7
        %v328 = vsub.s32 1, %v327
        %v329 = vrot.slane %v320, %v328
        %332 = vmatprep.subr.mxu0 %v289
        %333 = vmatpush1.msra.mxu0 %v288
        %334 = vmatprep.subr.mxu0 %v291
        %335 = vmatpush1.msra.mxu0 %v290
        %336 = vmatprep.subr.mxu0 %v293
        %337 = vmatpush1.msra.mxu0 %v292
        %338 = vmatprep.subr.mxu0 %v295
        %339 = vmatpush1.msra.mxu0 %v294
        %340 = vmatprep.subr.mxu0 %v297
        %341 = vmatpush1.msra.mxu0 %v296
        %342 = vmatprep.subr.mxu0 %v299
        %343 = vmatpush1.msra.mxu0 %v298
        %344 = vmatprep.subr.mxu0 %v301
        %345 = vmatpush1.msra.mxu0 %v300
        %346 = vmatprep.subr.mxu0 %v303
        %347 = vmatpush1.msra.mxu0 %v302
        %348 = vmatprep.subr.mxu0 %v305
        %349 = vmatpush1.msra.mxu0 %v304
        %350 = vmatprep.subr.mxu0 %v307
        %351 = vmatpush1.msra.mxu0 %v306
        %352 = vmatprep.subr.mxu0 %v309
        %353 = vmatpush1.msra.mxu0 %v308
        %354 = vmatprep.subr.mxu0 %v311
        %355 = vmatpush1.msra.mxu0 %v310
        %356 = vmatprep.subr.mxu0 %v313
        %357 = vmatpush1.msra.mxu0 %v312
        %358 = vmatprep.subr.mxu0 %v315
        %359 = vmatpush1.msra.mxu0 %v314
        %360 = vmatprep.subr.mxu0 %v317
        %361 = vmatpush1.msra.mxu0 %v316
        %362 = vmatprep.subr.mxu0 %v319
        %363 = vmatpush1.msra.mxu0 %v318
        %364 = vmatprep.subr.mxu0 0.0
        %365 = vmatpush1.msra.mxu0 0.0
        %366 = vmatprep.subr.mxu0 0.0
        %367 = vmatpush1.msra.mxu0 0.0
        %368 = vmatprep.subr.mxu0 0.0
        %369 = vmatpush1.msra.mxu0 0.0
        %370 = vmatprep.subr.mxu0 0.0
        %371 = vmatpush1.msra.mxu0 0.0
        %372 = vmatprep.subr.mxu0 0.0
        %373 = vmatpush1.msra.mxu0 0.0
        %374 = vmatprep.subr.mxu0 0.0
        %375 = vmatpush1.msra.mxu0 0.0
        %376 = vmatprep.subr.mxu0 0.0
        %377 = vmatpush1.msra.mxu0 0.0
        %378 = vmatprep.subr.mxu0 0.0
        %379 = vmatpush1.msra.mxu0 0.0
        %380 = vmatprep.subr.mxu0 0.0
        %381 = vmatpush1.msra.mxu0 0.0
        %382 = vmatprep.subr.mxu0 0.0
        %383 = vmatpush1.msra.mxu0 0.0
        %384 = vmatprep.subr.mxu0 0.0
        %385 = vmatpush1.msra.mxu0 0.0
        %386 = vmatprep.subr.mxu0 0.0
        %387 = vmatpush1.msra.mxu0 0.0
        %388 = vmatprep.subr.mxu0 0.0
        %389 = vmatpush1.msra.mxu0 0.0
        %390 = vmatprep.subr.mxu0 0.0
        %391 = vmatpush1.msra.mxu0 0.0
        %392 = vmatprep.subr.mxu0 0.0
        %393 = vmatpush1.msra.mxu0 0.0
        %394 = vmatprep.subr.mxu0 0.0
        %395 = vmatpush1.msra.mxu0 0.0
        %396 = vmatprep.mubr.f32.mxu0 0.0
        %397 = vmatmul.mubr.f32.gmra.mrb[0].mxu0 %v272
        %v398 = vpop.f32.mrb[0].mxu0
        %v399 = vadd.f32 %v325, %v398
        %v400 = vpop.f32.mrb[0].mxu0
        %v401 = vadd.f32 %v329, %v400
        %402 = vmatprep.mubr.f32.mxu0 0.0
        %403 = vmatmul.mubr.f32.gmra.mrb[0].mxu0 %v273
        %v404 = vpop.f32.mrb[0].mxu0
        %v405 = vadd.f32 %v325, %v404
        %v406 = vpop.f32.mrb[0].mxu0
        %v407 = vadd.f32 %v329, %v406
        %408 = vmatprep.mubr.f32.mxu0 0.0
        %409 = vmatmul.mubr.f32.gmra.mrb[0].mxu0 %v274
        %v410 = vpop.f32.mrb[0].mxu0
        %v411 = vadd.f32 %v325, %v410
        %v412 = vpop.f32.mrb[0].mxu0
        %v413 = vadd.f32 %v329, %v412
        %414 = vmatprep.mubr.f32.mxu0 0.0
        %415 = vmatmul.mubr.f32.gmra.mrb[0].mxu0 %v275
        %v416 = vpop.f32.mrb[0].mxu0
        %v417 = vadd.f32 %v325, %v416
        %v418 = vpop.f32.mrb[0].mxu0
        %v419 = vadd.f32 %v329, %v418
        %420 = vmatprep.mubr.f32.mxu0 0.0
        %421 = vmatmul.mubr.f32.gmra.mrb[0].mxu0 %v276
        %v422 = vpop.f32.mrb[0].mxu0
        %v423 = vadd.f32 %v325, %v422
        %v424 = vpop.f32.mrb[0].mxu0
        %v425 = vadd.f32 %v329, %v424
        %426 = vmatprep.mubr.f32.mxu0 0.0
        %427 = vmatmul.mubr.f32.gmra.mrb[0].mxu0 %v277
        %v428 = vpop.f32.mrb[0].mxu0
        %v429 = vadd.f32 %v325, %v428
        %v430 = vpop.f32.mrb[0].mxu0
        %v431 = vadd.f32 %v329, %v430
        %432 = vmatprep.mubr.f32.mxu0 0.0
        %433 = vmatmul.mubr.f32.gmra.mrb[0].mxu0 %v278
        %v434 = vpop.f32.mrb[0].mxu0
        %v435 = vadd.f32 %v325, %v434
        %v436 = vpop.f32.mrb[0].mxu0
        %v437 = vadd.f32 %v329, %v436
        %438 = vmatprep.mubr.f32.mxu0 0.0
        %439 = vmatmul.mubr.f32.gmra.mrb[0].mxu0 %v279
        %v440 = vpop.f32.mrb[0].mxu0
        %v441 = vadd.f32 %v325, %v440
        %v442 = vpop.f32.mrb[0].mxu0
        %v443 = vadd.f32 %v329, %v442
        %444 = vmatprep.mubr.f32.mxu0 0.0
        %445 = vmatmul.mubr.f32.gmra.mrb[0].mxu0 %v280
        %v446 = vpop.f32.mrb[0].mxu0
        %v447 = vadd.f32 %v325, %v446
        %v448 = vpop.f32.mrb[0].mxu0
        %v449 = vadd.f32 %v329, %v448
        %450 = vmatprep.mubr.f32.mxu0 0.0
        %451 = vmatmul.mubr.f32.gmra.mrb[0].mxu0 %v281
        %v452 = vpop.f32.mrb[0].mxu0
        %v453 = vadd.f32 %v325, %v452
        %v454 = vpop.f32.mrb[0].mxu0
        %v455 = vadd.f32 %v329, %v454
        %456 = vmatprep.mubr.f32.mxu0 0.0
        %457 = vmatmul.mubr.f32.gmra.mrb[0].mxu0 %v282
        %v458 = vpop.f32.mrb[0].mxu0
        %v459 = vadd.f32 %v325, %v458
        %v460 = vpop.f32.mrb[0].mxu0
        %v461 = vadd.f32 %v329, %v460
        %462 = vmatprep.mubr.f32.mxu0 0.0
        %463 = vmatmul.mubr.f32.gmra.mrb[0].mxu0 %v283
        %v464 = vpop.f32.mrb[0].mxu0
        %v465 = vadd.f32 %v325, %v464
        %v466 = vpop.f32.mrb[0].mxu0
        %v467 = vadd.f32 %v329, %v466
        %468 = vmatprep.mubr.f32.mxu0 0.0
        %469 = vmatmul.mubr.f32.gmra.mrb[0].mxu0 %v284
        %v470 = vpop.f32.mrb[0].mxu0
        %v471 = vadd.f32 %v325, %v470
        %v472 = vpop.f32.mrb[0].mxu0
        %v473 = vadd.f32 %v329, %v472
        %474 = vmatprep.mubr.f32.mxu0 0.0
        %475 = vmatmul.mubr.f32.gmra.mrb[0].mxu0 %v285
        %v476 = vpop.f32.mrb[0].mxu0
        %v477 = vadd.f32 %v325, %v476
        %v478 = vpop.f32.mrb[0].mxu0
        %v479 = vadd.f32 %v329, %v478
        %480 = vmatprep.mubr.f32.mxu0 0.0
        %481 = vmatmul.mubr.f32.gmra.mrb[0].mxu0 %v286
        %v482 = vpop.f32.mrb[0].mxu0
        %v483 = vadd.f32 %v325, %v482
        %v484 = vpop.f32.mrb[0].mxu0
        %v485 = vadd.f32 %v329, %v484
        %486 = vmatprep.mubr.f32.mxu0 0.0
        %487 = vmatmul.mubr.f32.gmra.mrb[0].mxu0 %v287
        %v488 = vpop.f32.mrb[0].mxu0
        %v489 = vadd.f32 %v325, %v488
        %v490 = vpop.f32.mrb[0].mxu0
        %v491 = vadd.f32 %v329, %v490
        %492 = vdwg.mxu0
        %v493 = vtanh.pop %v399
        %v494 = vtanh.pop %v405
        %v495 = vtanh.pop %v411
        %v496 = vtanh.pop %v417
        %v497 = vtanh.pop %v423
        %v498 = vtanh.pop %v429
        %v499 = vtanh.pop %v435
        %v500 = vtanh.pop %v441
        %v501 = vtanh.pop %v447
        %v502 = vtanh.pop %v453
        %v503 = vtanh.pop %v459
        %v504 = vtanh.pop %v465
        %v505 = vtanh.pop %v471
        %v506 = vtanh.pop %v477
        %v507 = vtanh.pop %v483
        %v508 = vtanh.pop %v489
        %v509 = vmul.f32 %v401, 0.5
        %v510 = vmul.f32 %v407, 0.5
        %v511 = vmul.f32 %v413, 0.5
        %v512 = vmul.f32 %v419, 0.5
        %v513 = vmul.f32 %v425, 0.5
        %v514 = vmul.f32 %v431, 0.5
        %v515 = vmul.f32 %v437, 0.5
        %v516 = vmul.f32 %v443, 0.5
        %v517 = vmul.f32 %v449, 0.5
        %v518 = vmul.f32 %v455, 0.5
        %v519 = vmul.f32 %v461, 0.5
        %v520 = vmul.f32 %v467, 0.5
        %v521 = vmul.f32 %v473, 0.5
        %v522 = vmul.f32 %v479, 0.5
        %v523 = vmul.f32 %v485, 0.5
        %v524 = vmul.f32 %v491, 0.5
        %v525 = vtanh.pop %v509
        %v526 = vtanh.pop %v510
        %v527 = vtanh.pop %v511
        %v528 = vtanh.pop %v512
        %v529 = vtanh.pop %v513
        %v530 = vtanh.pop %v514
        %v531 = vtanh.pop %v515
        %v532 = vtanh.pop %v516
        %v533 = vtanh.pop %v517
        %v534 = vtanh.pop %v518
        %v535 = vtanh.pop %v519
        %v536 = vtanh.pop %v520
        %v537 = vtanh.pop %v521
        %v538 = vtanh.pop %v522
        %v539 = vtanh.pop %v523
        %v540 = vtanh.pop %v524
        %v541 = vadd.f32 %v525, 1.0
        %v542 = vadd.f32 %v526, 1.0
        %v543 = vadd.f32 %v527, 1.0
        %v544 = vadd.f32 %v528, 1.0
        %v545 = vadd.f32 %v529, 1.0
        %v546 = vadd.f32 %v530, 1.0
        %v547 = vadd.f32 %v531, 1.0
        %v548 = vadd.f32 %v532, 1.0
        %v549 = vadd.f32 %v533, 1.0
        %v550 = vadd.f32 %v534, 1.0
        %v551 = vadd.f32 %v535, 1.0
        %v552 = vadd.f32 %v536, 1.0
        %v553 = vadd.f32 %v537, 1.0
        %v554 = vadd.f32 %v538, 1.0
        %v555 = vadd.f32 %v539, 1.0
        %v556 = vadd.f32 %v540, 1.0
        %v557 = vmul.f32 %v541, 0.5
        %v558 = vmul.f32 %v542, 0.5
        %v559 = vmul.f32 %v543, 0.5
        %v560 = vmul.f32 %v544, 0.5
        %v561 = vmul.f32 %v545, 0.5
        %v562 = vmul.f32 %v546, 0.5
        %v563 = vmul.f32 %v547, 0.5
        %v564 = vmul.f32 %v548, 0.5
        %v565 = vmul.f32 %v549, 0.5
        %v566 = vmul.f32 %v550, 0.5
        %v567 = vmul.f32 %v551, 0.5
        %v568 = vmul.f32 %v552, 0.5
        %v569 = vmul.f32 %v553, 0.5
        %v570 = vmul.f32 %v554, 0.5
        %v571 = vmul.f32 %v555, 0.5
        %v572 = vmul.f32 %v556, 0.5
        %v573 = vmul.f32 %v493, %v557
        %v574 = vmul.f32 %v494, %v558
        %v575 = vmul.f32 %v495, %v559
        %v576 = vmul.f32 %v496, %v560
        %v577 = vmul.f32 %v497, %v561
        %v578 = vmul.f32 %v498, %v562
        %v579 = vmul.f32 %v499, %v563
        %v580 = vmul.f32 %v500, %v564
        %v581 = vmul.f32 %v501, %v565
        %v582 = vmul.f32 %v502, %v566
        %v583 = vmul.f32 %v503, %v567
        %v584 = vmul.f32 %v504, %v568
        %v585 = vmul.f32 %v505, %v569
        %v586 = vmul.f32 %v506, %v570
        %v587 = vmul.f32 %v507, %v571
        %v588 = vmul.f32 %v508, %v572
        %v589 = vld [vmem:[#allocation2] sm:$0x1]
        %v590 = vld [vmem:[%s3] sm:$0x1]
        %v592 = vlaneseq
        %v593 = vshrl.u32 %v592, 7
        %v594 = vsub.s32 0, %v593
        %v595 = vrot.slane %v590, %v594
        %v597 = vmul.f32 %v573, %v595
        %v598 = vmul.f32 %v574, %v595
        %v599 = vmul.f32 %v575, %v595
        %v600 = vmul.f32 %v576, %v595
        %v601 = vmul.f32 %v577, %v595
        %v602 = vmul.f32 %v578, %v595
        %v603 = vmul.f32 %v579, %v595
        %v604 = vmul.f32 %v580, %v595
        %v605 = vmul.f32 %v581, %v595
        %v606 = vmul.f32 %v582, %v595
        %v607 = vmul.f32 %v583, %v595
        %v608 = vmul.f32 %v584, %v595
        %v609 = vmul.f32 %v585, %v595
        %v610 = vmul.f32 %v586, %v595
        %v611 = vmul.f32 %v587, %v595
        %v612 = vmul.f32 %v588, %v595
        %613 = vadd.xlane.f32.xlu0 %v597
        %v614 = vpop.xlane.xlu0 %613
        %615 = vadd.xlane.f32.xlu0 %v598
        %v616 = vpop.xlane.xlu0 %615
        %617 = vadd.xlane.f32.xlu0 %v599
        %v618 = vpop.xlane.xlu0 %617
        %619 = vadd.xlane.f32.xlu0 %v600
        %v620 = vpop.xlane.xlu0 %619
        %621 = vadd.xlane.f32.xlu0 %v601
        %v622 = vpop.xlane.xlu0 %621
        %623 = vadd.xlane.f32.xlu0 %v602
        %v624 = vpop.xlane.xlu0 %623
        %625 = vadd.xlane.f32.xlu0 %v603
        %v626 = vpop.xlane.xlu0 %625
        %627 = vadd.xlane.f32.xlu0 %v604
        %v628 = vpop.xlane.xlu0 %627
        %629 = vadd.xlane.f32.xlu0 %v605
        %v630 = vpop.xlane.xlu0 %629
        %631 = vadd.xlane.f32.xlu0 %v606
        %v632 = vpop.xlane.xlu0 %631
        %633 = vadd.xlane.f32.xlu0 %v607
        %v634 = vpop.xlane.xlu0 %633
        %635 = vadd.xlane.f32.xlu0 %v608
        %v636 = vpop.xlane.xlu0 %635
        %637 = vadd.xlane.f32.xlu0 %v609
        %v638 = vpop.xlane.xlu0 %637
        %639 = vadd.xlane.f32.xlu0 %v610
        %v640 = vpop.xlane.xlu0 %639
        %641 = vadd.xlane.f32.xlu0 %v611
        %v642 = vpop.xlane.xlu0 %641
        %643 = vadd.xlane.f32.xlu0 %v612
        %v644 = vpop.xlane.xlu0 %643
        %v646 = vlaneseq
        %v647 = vshrl.u32 %v646, 7
        %v648 = vsub.s32 0, %v647
        %v649 = vrot.slane %v589, %v648
        %v651 = vadd.f32 %v614, %v649
        %v652 = vadd.f32 %v616, %v649
        %v653 = vadd.f32 %v618, %v649
        %v654 = vadd.f32 %v620, %v649
        %v655 = vadd.f32 %v622, %v649
        %v656 = vadd.f32 %v624, %v649
        %v657 = vadd.f32 %v626, %v649
        %v658 = vadd.f32 %v628, %v649
        %v659 = vadd.f32 %v630, %v649
        %v660 = vadd.f32 %v632, %v649
        %v661 = vadd.f32 %v634, %v649
        %v662 = vadd.f32 %v636, %v649
        %v663 = vadd.f32 %v638, %v649
        %v664 = vadd.f32 %v640, %v649
        %v665 = vadd.f32 %v642, %v649
        %v666 = vadd.f32 %v644, %v649
        %vm667 = vcmask 7168
        %668 = vst.msk [vmem:[%s261] sm:$0xff] %vm667, %v651
        %669 = vst.msk [vmem:[%s261 + $0x8] sm:$0xff] %vm667, %v652
        %670 = vst.msk [vmem:[%s261 + $0x10] sm:$0xff] %vm667, %v653
        %671 = vst.msk [vmem:[%s261 + $0x18] sm:$0xff] %vm667, %v654
        %672 = vst.msk [vmem:[%s261 + $0x20] sm:$0xff] %vm667, %v655
        %673 = vst.msk [vmem:[%s261 + $0x28] sm:$0xff] %vm667, %v656
        %674 = vst.msk [vmem:[%s261 + $0x30] sm:$0xff] %vm667, %v657
        %675 = vst.msk [vmem:[%s261 + $0x38] sm:$0xff] %vm667, %v658
        %676 = vst.msk [vmem:[%s261 + $0x40] sm:$0xff] %vm667, %v659
        %677 = vst.msk [vmem:[%s261 + $0x48] sm:$0xff] %vm667, %v660
        %678 = vst.msk [vmem:[%s261 + $0x50] sm:$0xff] %vm667, %v661
        %679 = vst.msk [vmem:[%s261 + $0x58] sm:$0xff] %vm667, %v662
        %680 = vst.msk [vmem:[%s261 + $0x60] sm:$0xff] %vm667, %v663
        %681 = vst.msk [vmem:[%s261 + $0x68] sm:$0xff] %vm667, %v664
        %682 = vst.msk [vmem:[%s261 + $0x70] sm:$0xff] %vm667, %v665
        %683 = vst.msk [vmem:[%s261 + $0x78] sm:$0xff] %vm667, %v666
        %s684 = sand.u32 %s140, 1
        %s685 = sand.u32 %s140, 1
        %s686 = smul.addr %s685, 128
        %s687 = scalar_lea.vmem [#allocation7], %s686
        // Predicated region
        $region49: #{tpu_custom_call.1} parent=39 // pred_check
          %p688 = pneg %p150
        $region50: #{tpu_custom_call.1} parent=39 // pred_check_branch
          %690 = sbr.rel (%p688) target = $region52
        $region51: #{tpu_custom_call.1} parent=39 // pred_region
          %s691 = smul.u32 16, %s22
          %s692 = ssub.s32 38, %s691
          %p693 = scmp.lt.s32.totalorder %s692, 16
          %s694 = scalar_select %p693, %s692, 16
          %s695 = smul.u32 128, %s694
          %p696 = scmp.ne.s32.totalorder 0, %s695
          %s697 = smul.addr %s691, 8
          %s698 = scalar_lea.vmem %s5, %s697
          // Predicated region
          $region53: #{tpu_custom_call.1} parent=51 // pred_check
            %p699 = pneg %p696
          $region54: #{tpu_custom_call.1} parent=51 // pred_check_branch
            %701 = sbr.rel (%p699) target = $region56
          $region55: #{tpu_custom_call.1} parent=51 // pred_region
            // Predicated region
            $region57: #{tpu_custom_call.1} parent=55 // pred_check
              _
            $region58: #{tpu_custom_call.1} parent=55 // pred_check_branch
              %703 = sbr.rel (0) target = $region60
            $region59: #{tpu_custom_call.1} parent=55 // pred_region
              // Predicated region
              $region79: #{tpu_custom_call.1} parent=59 // pred_check
                _
              $region80: #{tpu_custom_call.1} parent=59 // pred_check_branch
                %782 = sbr.rel (0) target = $region82
              $region81: #{tpu_custom_call.1} parent=59 // pred_region
                %s783 = sshrl.u32 %s694, 4
                // While loop
                $region83: #{tpu_custom_call.1} parent=81 // loop_pre_header
                  _
                $region84: #{tpu_custom_call.1} parent=81 // loop_header
                  %s785 = sphi 0, %s787
                  %p786 = scmp.ge.s32.totalorder %s785, %s783
                  %s790 = sphi 0, %s827
                  %s791 = sphi %s687, %s830
                  %s792 = sphi %s698, %s831
                $region85: #{tpu_custom_call.1} parent=81 // loop_header_branch
                  %789 = sbr.rel (%p786) target = $region89
                $region86: #{tpu_custom_call.1} parent=81 // loop_body
                  %v793 = vld [vmem:[%s791] sm:$0xff]
                  %794 = vst [vmem:[%s792] sm:$0xff] %v793
                  %v795 = vld [vmem:[%s791 + $0x8] sm:$0xff]
                  %796 = vst [vmem:[%s792 + $0x8] sm:$0xff] %v795
                  %v797 = vld [vmem:[%s791 + $0x10] sm:$0xff]
                  %798 = vst [vmem:[%s792 + $0x10] sm:$0xff] %v797
                  %v799 = vld [vmem:[%s791 + $0x18] sm:$0xff]
                  %800 = vst [vmem:[%s792 + $0x18] sm:$0xff] %v799
                  %v801 = vld [vmem:[%s791 + $0x20] sm:$0xff]
                  %802 = vst [vmem:[%s792 + $0x20] sm:$0xff] %v801
                  %v803 = vld [vmem:[%s791 + $0x28] sm:$0xff]
                  %804 = vst [vmem:[%s792 + $0x28] sm:$0xff] %v803
                  %v805 = vld [vmem:[%s791 + $0x30] sm:$0xff]
                  %806 = vst [vmem:[%s792 + $0x30] sm:$0xff] %v805
                  %v807 = vld [vmem:[%s791 + $0x38] sm:$0xff]
                  %808 = vst [vmem:[%s792 + $0x38] sm:$0xff] %v807
                  %v809 = vld [vmem:[%s791 + $0x40] sm:$0xff]
                  %810 = vst [vmem:[%s792 + $0x40] sm:$0xff] %v809
                  %v811 = vld [vmem:[%s791 + $0x48] sm:$0xff]
                  %812 = vst [vmem:[%s792 + $0x48] sm:$0xff] %v811
                  %v813 = vld [vmem:[%s791 + $0x50] sm:$0xff]
                  %814 = vst [vmem:[%s792 + $0x50] sm:$0xff] %v813
                  %v815 = vld [vmem:[%s791 + $0x58] sm:$0xff]
                  %816 = vst [vmem:[%s792 + $0x58] sm:$0xff] %v815
                  %v817 = vld [vmem:[%s791 + $0x60] sm:$0xff]
                  %818 = vst [vmem:[%s792 + $0x60] sm:$0xff] %v817
                  %v819 = vld [vmem:[%s791 + $0x68] sm:$0xff]
                  %820 = vst [vmem:[%s792 + $0x68] sm:$0xff] %v819
                  %v821 = vld [vmem:[%s791 + $0x70] sm:$0xff]
                  %822 = vst [vmem:[%s792 + $0x70] sm:$0xff] %v821
                  %v823 = vld [vmem:[%s791 + $0x78] sm:$0xff]
                  %824 = vst [vmem:[%s792 + $0x78] sm:$0xff] %v823
                  %s825 = sadd.s32 1, %s790
                  %p826 = scmp.ge.s32.totalorder %s825, %s783
                  %s827 = scalar_select %p826, 0, %s825
                  %s828 = smul.u32 %s827, 128
                  %s829 = smul.u32 %s827, 128
                  %s830 = scalar_lea.vmem %s687, %s828 [#allocation7]
                  %s831 = scalar_lea.vmem %s698, %s829
                $region87: #{tpu_custom_call.1} parent=81 // loop_footer
                  %s787 = sadd.s32 %s785, 1
                $region88: #{tpu_custom_call.1} parent=81 // loop_footer_branch
                  %784 = sbr.rel target = $region84
                $region89: #{tpu_custom_call.1} parent=81 // loop_exit
                  _
                %s832 = sshrl.u32 %s694, 4
                %s833 = sand.u32 %s694, 15
                %s834 = smul.u32 %s832, 16
                %s835 = smul.u32 8, %s834
                %s836 = scalar_lea.vmem %s687, %s835 [#allocation7]
                %s837 = smul.u32 8, %s834
                %s838 = scalar_lea.vmem %s698, %s837
                // While loop
                $region90: #{tpu_custom_call.1} parent=81 // loop_pre_header
                  _
                $region91: #{tpu_custom_call.1} parent=81 // loop_header
                  %s840 = sphi 0, %s842
                  %p841 = scmp.ge.s32.totalorder %s840, %s833
                  %s845 = sphi 0, %s852
                  %s846 = sphi %s836, %s855
                  %s847 = sphi %s838, %s856
                $region92: #{tpu_custom_call.1} parent=81 // loop_header_branch
                  %844 = sbr.rel (%p841) target = $region96
                $region93: #{tpu_custom_call.1} parent=81 // loop_body
                  %v848 = vld [vmem:[%s846] sm:$0xff]
                  %849 = vst [vmem:[%s847] sm:$0xff] %v848
                  %s850 = sadd.s32 1, %s845
                  %p851 = scmp.ge.s32.totalorder %s850, %s833
                  %s852 = scalar_select %p851, 0, %s850
                  %s853 = smul.u32 %s852, 8
                  %s854 = smul.u32 %s852, 8
                  %s855 = scalar_lea.vmem %s836, %s853 [#allocation7]
                  %s856 = scalar_lea.vmem %s838, %s854
                $region94: #{tpu_custom_call.1} parent=81 // loop_footer
                  %s842 = sadd.s32 %s840, 1
                $region95: #{tpu_custom_call.1} parent=81 // loop_footer_branch
                  %839 = sbr.rel target = $region91
                $region96: #{tpu_custom_call.1} parent=81 // loop_exit
                  _
              $region82: #{tpu_custom_call.1} parent=59 // pred_fallthru
                _
              // Predicated region
              $region97: #{tpu_custom_call.1} parent=59 // pred_check
                _
              $region98: #{tpu_custom_call.1} parent=59 // pred_check_branch
                %858 = sbr.rel target = $region100
              $region99: #{tpu_custom_call.1} parent=59 // pred_region
                _
              $region100: #{tpu_custom_call.1} parent=59 // pred_fallthru
                _
            $region60: #{tpu_custom_call.1} parent=55 // pred_fallthru
              _
            // Predicated region
            $region61: #{tpu_custom_call.1} parent=55 // pred_check
              _
            $region62: #{tpu_custom_call.1} parent=55 // pred_check_branch
              %705 = sbr.rel target = $region64
            $region63: #{tpu_custom_call.1} parent=55 // pred_region
              %s707 = sshrl.u32 %s694, 4
              // While loop
              $region65: #{tpu_custom_call.1} parent=63 // loop_pre_header
                _
              $region66: #{tpu_custom_call.1} parent=63 // loop_header
                %s709 = sphi 0, %s711
                %p710 = scmp.ge.s32.totalorder %s709, %s707
                %s714 = sphi 0, %s751
                %s715 = sphi %s687, %s754
                %s716 = sphi %s698, %s755
              $region67: #{tpu_custom_call.1} parent=63 // loop_header_branch
                %713 = sbr.rel (%p710) target = $region71
              $region68: #{tpu_custom_call.1} parent=63 // loop_body
                %v717 = vld [vmem:[%s715] sm:$0xff]
                %718 = vst [vmem:[%s716] sm:$0xff] %v717
                %v719 = vld [vmem:[%s715 + $0x8] sm:$0xff]
                %720 = vst [vmem:[%s716 + $0x8] sm:$0xff] %v719
                %v721 = vld [vmem:[%s715 + $0x10] sm:$0xff]
                %722 = vst [vmem:[%s716 + $0x10] sm:$0xff] %v721
                %v723 = vld [vmem:[%s715 + $0x18] sm:$0xff]
                %724 = vst [vmem:[%s716 + $0x18] sm:$0xff] %v723
                %v725 = vld [vmem:[%s715 + $0x20] sm:$0xff]
                %726 = vst [vmem:[%s716 + $0x20] sm:$0xff] %v725
                %v727 = vld [vmem:[%s715 + $0x28] sm:$0xff]
                %728 = vst [vmem:[%s716 + $0x28] sm:$0xff] %v727
                %v729 = vld [vmem:[%s715 + $0x30] sm:$0xff]
                %730 = vst [vmem:[%s716 + $0x30] sm:$0xff] %v729
                %v731 = vld [vmem:[%s715 + $0x38] sm:$0xff]
                %732 = vst [vmem:[%s716 + $0x38] sm:$0xff] %v731
                %v733 = vld [vmem:[%s715 + $0x40] sm:$0xff]
                %734 = vst [vmem:[%s716 + $0x40] sm:$0xff] %v733
                %v735 = vld [vmem:[%s715 + $0x48] sm:$0xff]
                %736 = vst [vmem:[%s716 + $0x48] sm:$0xff] %v735
                %v737 = vld [vmem:[%s715 + $0x50] sm:$0xff]
                %738 = vst [vmem:[%s716 + $0x50] sm:$0xff] %v737
                %v739 = vld [vmem:[%s715 + $0x58] sm:$0xff]
                %740 = vst [vmem:[%s716 + $0x58] sm:$0xff] %v739
                %v741 = vld [vmem:[%s715 + $0x60] sm:$0xff]
                %742 = vst [vmem:[%s716 + $0x60] sm:$0xff] %v741
                %v743 = vld [vmem:[%s715 + $0x68] sm:$0xff]
                %744 = vst [vmem:[%s716 + $0x68] sm:$0xff] %v743
                %v745 = vld [vmem:[%s715 + $0x70] sm:$0xff]
                %746 = vst [vmem:[%s716 + $0x70] sm:$0xff] %v745
                %v747 = vld [vmem:[%s715 + $0x78] sm:$0xff]
                %748 = vst [vmem:[%s716 + $0x78] sm:$0xff] %v747
                %s749 = sadd.s32 1, %s714
                %p750 = scmp.ge.s32.totalorder %s749, %s707
                %s751 = scalar_select %p750, 0, %s749
                %s752 = smul.u32 %s751, 128
                %s753 = smul.u32 %s751, 128
                %s754 = scalar_lea.vmem %s687, %s752 [#allocation7]
                %s755 = scalar_lea.vmem %s698, %s753
              $region69: #{tpu_custom_call.1} parent=63 // loop_footer
                %s711 = sadd.s32 %s709, 1
              $region70: #{tpu_custom_call.1} parent=63 // loop_footer_branch
                %708 = sbr.rel target = $region66
              $region71: #{tpu_custom_call.1} parent=63 // loop_exit
                _
              %s756 = sshrl.u32 %s694, 4
              %s757 = sand.u32 %s694, 15
              %s758 = smul.u32 %s756, 16
              %s759 = smul.u32 8, %s758
              %s760 = scalar_lea.vmem %s687, %s759 [#allocation7]
              %s761 = smul.u32 8, %s758
              %s762 = scalar_lea.vmem %s698, %s761
              // While loop
              $region72: #{tpu_custom_call.1} parent=63 // loop_pre_header
                _
              $region73: #{tpu_custom_call.1} parent=63 // loop_header
                %s764 = sphi 0, %s766
                %p765 = scmp.ge.s32.totalorder %s764, %s757
                %s769 = sphi 0, %s776
                %s770 = sphi %s760, %s779
                %s771 = sphi %s762, %s780
              $region74: #{tpu_custom_call.1} parent=63 // loop_header_branch
                %768 = sbr.rel (%p765) target = $region78
              $region75: #{tpu_custom_call.1} parent=63 // loop_body
                %v772 = vld [vmem:[%s770] sm:$0xff]
                %773 = vst [vmem:[%s771] sm:$0xff] %v772
                %s774 = sadd.s32 1, %s769
                %p775 = scmp.ge.s32.totalorder %s774, %s757
                %s776 = scalar_select %p775, 0, %s774
                %s777 = smul.u32 %s776, 8
                %s778 = smul.u32 %s776, 8
                %s779 = scalar_lea.vmem %s760, %s777 [#allocation7]
                %s780 = scalar_lea.vmem %s762, %s778
              $region76: #{tpu_custom_call.1} parent=63 // loop_footer
                %s766 = sadd.s32 %s764, 1
              $region77: #{tpu_custom_call.1} parent=63 // loop_footer_branch
                %763 = sbr.rel target = $region73
              $region78: #{tpu_custom_call.1} parent=63 // loop_exit
                _
            $region64: #{tpu_custom_call.1} parent=55 // pred_fallthru
              _
          $region56: #{tpu_custom_call.1} parent=51 // pred_fallthru
            _
          %859 = vnop
        $region52: #{tpu_custom_call.1} parent=39 // pred_fallthru
          _
      $region40: #{tpu_custom_call.1} parent=5 // pred_fallthru
        _
      %p860 = scmp.le.s32.totalorder 2, %s17
      // Predicated region
      $region101: #{tpu_custom_call.1} parent=5 // pred_check
        %p861 = pneg %p860
      $region102: #{tpu_custom_call.1} parent=5 // pred_check_branch
        %863 = sbr.rel (%p861) target = $region104
      $region103: #{tpu_custom_call.1} parent=5 // pred_region
        %s864 = ssub.s32 %s17, 2
        // Predicated region
        $region105: #{tpu_custom_call.1} parent=103 // pred_check
          %p865 = pneg %p156
        $region106: #{tpu_custom_call.1} parent=103 // pred_check_branch
          %867 = sbr.rel (%p865) target = $region108
        $region107: #{tpu_custom_call.1} parent=103 // pred_region
          %s868 = sand.u32 %s141, 1
          %s869 = sand.u32 %s141, 1
          %s870 = smul.addr %s869, 128
          %s871 = scalar_lea.vmem [#allocation7], %s870
        $region108: #{tpu_custom_call.1} parent=103 // pred_fallthru
          _
      $region104: #{tpu_custom_call.1} parent=5 // pred_fallthru
        _
    $region6: #{tpu_custom_call.1} parent=1 // loop_footer
      %s21 = sadd.s32 1, %s17
    $region7: #{tpu_custom_call.1} parent=1 // loop_footer_branch
      %16 = sbr.rel target = $region3
    $region8: #{tpu_custom_call.1} parent=1 // loop_exit
      _
    %872 = vsyncpa [#allocation4], 1
    %s873 = scalar_lea.sflag [#allocation4], 1
    %874 = vsyncpa %s873, 1
    %875 = vsyncpa [#allocation6], 1

// kernel: tpu_custom_call.1
$region0: #{tpu_custom_call.1}
  #allocation0 [shape = 'u32[]', space=smem, size = 0x4, offset = 0x4, fixed_abs, tag = 'smem constant byte address 0x4 - core index']
  #allocation1 [shape = 'u32[144,128]{1,0:T(1,128)}', space=vmem, size = 0x12000, scoped, tag = 'internal scratch']
  #allocation2 [shape = 'f32[1,1]{1,0:T(1,128)S(1)}', space=vmem, size = 0x200, scoped, tag = 'scoped memory for tpu_custom_call.1']
  %s0 = inlined_call_operand.hbm [shape: f32[300,128], index: 0, kind: input, shape index: {}]
  %s1 = inlined_call_operand.hbm [shape: f32[128,256], index: 1, kind: input, shape index: {}]
  %s2 = inlined_call_operand.vmem [shape: f32[1,256], index: 2, kind: input, shape index: {}]
  %s3 = inlined_call_operand.vmem [shape: f32[1,128], index: 3, kind: input, shape index: {}]
  %s4 = inlined_call_operand.<no memory space> [shape: f32[1,1], index: 4, kind: input, shape index: {}]
  %s5 = inlined_call_operand.vmem [shape: f32[300,1], index: 5, kind: output, shape index: {}]
  %s6 = sld [smem:[#allocation0]]
  $region109: #{tpu_custom_call.1} parent=0
    _
  %s8 = ssub.s32 1, %s6
  %s9 = scalar_select 0, %s8, %s6
  %v10 = vstv %s4
  %11 = vst [vmem:[#allocation2] sm:$0x1] %v10
  $region1: #{tpu_custom_call.1} parent=0
    #allocation3 [shape = 'u8[131072]{0}', space=vmem, size = 0x20000, scoped, tag = 'input window, operand 0']
    #allocation4 [shape = 's32[2]{0}', space=sflag, size = 0x8, scoped, tag = 'scoped memory for tpu_custom_call.1']
    #allocation5 [shape = 'u8[131072]{0}', space=vmem, size = 0x20000, scoped, tag = 'input window, operand 1, single buffered']
    #allocation6 [shape = 's32[1]{0}', space=sflag, size = 0x4, scoped, tag = 'scoped memory for tpu_custom_call.1']
    #allocation7 [shape = 'u8[131072]{0}', space=vmem, size = 0x20000, scoped, tag = 'output window, operand 0']
    %12 = vsyncpa [#allocation4], 0
    %s13 = scalar_lea.sflag [#allocation4], 1
    %14 = vsyncpa %s13, 0
    %15 = vsyncpa [#allocation6], 0
    loop: start=0, step=1, limit=5
    $region2: #{tpu_custom_call.1} parent=1 // loop_pre_header
      _
    $region3: #{tpu_custom_call.1} parent=1 // loop_header
      %s17 = sphi 0, %s21
      %p18 = scmp.ge.s32.totalorder %s17, 5
      %s27 = sphi 0, %s29
      %s30 = sphi 0, %s27
      %s31 = sphi 0, %s30
      %s47 = sphi 0, %s31
      %s51 = sphi 0, %s51
      %s53 = sphi 0, %s51
      %s54 = sphi 0, %s53
      %s68 = sphi 0, %s54
      %s72 = sphi 0, %s72
      %s74 = sphi 0, %s72
      %s75 = sphi 0, %s74
      %s89 = sphi 0, %s75
      %s93 = sphi 0, %s93
      %s95 = sphi 0, %s93
      %s96 = sphi 0, %s95
      %s110 = sphi 0, %s96
      %s114 = sphi 0, %s114
      %s116 = sphi 0, %s114
      %s117 = sphi 0, %s116
      %s131 = sphi 0, %s117
      %s137 = sphi 0, %s139
      %s140 = sphi 0, %s137
      %s141 = sphi 0, %s140
      %s157 = sphi 0, %s141
    $region4: #{tpu_custom_call.1} parent=1 // loop_header_branch
      %20 = sbr.rel (%p18) target = $region8
    $region5: #{tpu_custom_call.1} parent=1 // loop_body
      %s22 = ssub.s32 %s17, 1
      %s23 = ssub.s32 %s17, 2
      %s24 = sadd.s32 %s17, 1
      %s25 = ssub.s32 %s17, %s24
      %p26 = scmp.eq.s32.totalorder %s25, 0
      %s28 = sadd.s32 %s27, 1
      %s29 = scalar_select %p26, %s27, %s28
      %p32 = pneg %p26
      %p33 = scmp.eq.s32.totalorder %s17, 2
      %p34 = por %p32, %p33
      %p35 = scmp.ne.s32.totalorder %s27, %s30
      %p36 = scmp.eq.s32.totalorder %s17, 0
      %p37 = por %p35, %p36
      %p38 = scmp.ne.s32.totalorder %s27, %s30
      %p39 = scmp.eq.s32.totalorder %s22, 2
      %p40 = por %p38, %p39
      %p41 = scmp.ne.s32.totalorder %s30, %s31
      %p42 = scmp.eq.s32.totalorder %s22, 0
      %p43 = por %p41, %p42
      %p44 = scmp.ne.s32.totalorder %s30, %s31
      %p45 = scmp.eq.s32.totalorder %s23, 2
      %p46 = por %p44, %p45
      %p48 = scmp.ne.s32.totalorder %s31, %s47
      %p49 = scmp.eq.s32.totalorder %s23, 0
      %p50 = por %p48, %p49
      %s52 = sadd.s32 %s51, 1
      %p55 = scmp.eq.s32.totalorder %s17, 2
      %p56 = scmp.ne.s32.totalorder %s51, %s53
      %p57 = scmp.eq.s32.totalorder %s17, 0
      %p58 = por %p56, %p57
      %p59 = scmp.ne.s32.totalorder %s51, %s53
      %p60 = scmp.eq.s32.totalorder %s22, 2
      %p61 = por %p59, %p60
      %p62 = scmp.ne.s32.totalorder %s53, %s54
      %p63 = scmp.eq.s32.totalorder %s22, 0
      %p64 = por %p62, %p63
      %p65 = scmp.ne.s32.totalorder %s53, %s54
      %p66 = scmp.eq.s32.totalorder %s23, 2
      %p67 = por %p65, %p66
      %p69 = scmp.ne.s32.totalorder %s54, %s68
      %p70 = scmp.eq.s32.totalorder %s23, 0
      %p71 = por %p69, %p70
      %s73 = sadd.s32 %s72, 1
      %p76 = scmp.eq.s32.totalorder %s17, 2
      %p77 = scmp.ne.s32.totalorder %s72, %s74
      %p78 = scmp.eq.s32.totalorder %s17, 0
      %p79 = por %p77, %p78
      %p80 = scmp.ne.s32.totalorder %s72, %s74
      %p81 = scmp.eq.s32.totalorder %s22, 2
      %p82 = por %p80, %p81
      %p83 = scmp.ne.s32.totalorder %s74, %s75
      %p84 = scmp.eq.s32.totalorder %s22, 0
      %p85 = por %p83, %p84
      %p86 = scmp.ne.s32.totalorder %s74, %s75
      %p87 = scmp.eq.s32.totalorder %s23, 2
      %p88 = por %p86, %p87
      %p90 = scmp.ne.s32.totalorder %s75, %s89
      %p91 = scmp.eq.s32.totalorder %s23, 0
      %p92 = por %p90, %p91
      %s94 = sadd.s32 %s93, 1
      %p97 = scmp.eq.s32.totalorder %s17, 2
      %p98 = scmp.ne.s32.totalorder %s93, %s95
      %p99 = scmp.eq.s32.totalorder %s17, 0
      %p100 = por %p98, %p99
      %p101 = scmp.ne.s32.totalorder %s93, %s95
      %p102 = scmp.eq.s32.totalorder %s22, 2
      %p103 = por %p101, %p102
      %p104 = scmp.ne.s32.totalorder %s95, %s96
      %p105 = scmp.eq.s32.totalorder %s22, 0
      %p106 = por %p104, %p105
      %p107 = scmp.ne.s32.totalorder %s95, %s96
      %p108 = scmp.eq.s32.totalorder %s23, 2
      %p109 = por %p107, %p108
      %p111 = scmp.ne.s32.totalorder %s96, %s110
      %p112 = scmp.eq.s32.totalorder %s23, 0
      %p113 = por %p111, %p112
      %s115 = sadd.s32 %s114, 1
      %p118 = scmp.eq.s32.totalorder %s17, 2
      %p119 = scmp.ne.s32.totalorder %s114, %s116
      %p120 = scmp.eq.s32.totalorder %s17, 0
      %p121 = por %p119, %p120
      %p122 = scmp.ne.s32.totalorder %s114, %s116
      %p123 = scmp.eq.s32.totalorder %s22, 2
      %p124 = por %p122, %p123
      %p125 = scmp.ne.s32.totalorder %s116, %s117
      %p126 = scmp.eq.s32.totalorder %s22, 0
      %p127 = por %p125, %p126
      %p128 = scmp.ne.s32.totalorder %s116, %s117
      %p129 = scmp.eq.s32.totalorder %s23, 2
      %p130 = por %p128, %p129
      %p132 = scmp.ne.s32.totalorder %s117, %s131
      %p133 = scmp.eq.s32.totalorder %s23, 0
      %p134 = por %p132, %p133
      %s135 = ssub.s32 %s17, %s24
      %p136 = scmp.eq.s32.totalorder %s135, 0
      %s138 = sadd.s32 %s137, 1
      %s139 = scalar_select %p136, %s137, %s138
      %p142 = pneg %p136
      %p143 = scmp.eq.s32.totalorder %s17, 2
      %p144 = por %p142, %p143
      %p145 = scmp.ne.s32.totalorder %s137, %s140
      %p146 = scmp.eq.s32.totalorder %s17, 0
      %p147 = por %p145, %p146
      %p148 = scmp.ne.s32.totalorder %s137, %s140
      %p149 = scmp.eq.s32.totalorder %s22, 2
      %p150 = por %p148, %p149
      %p151 = scmp.ne.s32.totalorder %s140, %s141
      %p152 = scmp.eq.s32.totalorder %s22, 0
      %p153 = por %p151, %p152
      %p154 = scmp.ne.s32.totalorder %s140, %s141
      %p155 = scmp.eq.s32.totalorder %s23, 2
      %p156 = por %p154, %p155
      %p158 = scmp.ne.s32.totalorder %s141, %s157
      %p159 = scmp.eq.s32.totalorder %s23, 0
      %p160 = por %p158, %p159
      %p161 = scmp.le.s32.totalorder 1, %s17
      %p162 = scmp.lt.s32.totalorder %s17, 4
      %p163 = pnand %p161, %p162
      %p164 = pneg %p163
      // Predicated region
      $region9: #{tpu_custom_call.1} parent=5 // pred_check
        _
      $region10: #{tpu_custom_call.1} parent=5 // pred_check_branch
        %166 = sbr.rel (%p163) target = $region12
      $region11: #{tpu_custom_call.1} parent=5 // pred_region
        %s167 = ssub.s32 %s17, 1
        // Predicated region
        $region13: #{tpu_custom_call.1} parent=11 // pred_check
          %p168 = pneg %p64
        $region14: #{tpu_custom_call.1} parent=11 // pred_check_branch
          %170 = sbr.rel (%p168) target = $region16
        $region15: #{tpu_custom_call.1} parent=11 // pred_region
          %s172 = ssub.s32 4096, 4096
          %173 = vsyncadd [#allocation6], %s172
          %s174 = sshll.u32 [#allocation5], 4
          %s175 = int_to_ptr.vmem [resolvable:$true] %s174
          %180 = dma.hbm_to_vmem [thread:$0]  %s1, 4096, %s175, [#allocation6], 256, 256, 16
        $region16: #{tpu_custom_call.1} parent=11 // pred_fallthru
          _
        // Predicated region
        $region17: #{tpu_custom_call.1} parent=11 // pred_check
          %p181 = pneg %p85
        $region18: #{tpu_custom_call.1} parent=11 // pred_check_branch
          %183 = sbr.rel (%p181) target = $region20
        $region19: #{tpu_custom_call.1} parent=11 // pred_region
          _
        $region20: #{tpu_custom_call.1} parent=11 // pred_fallthru
          _
        // Predicated region
        $region21: #{tpu_custom_call.1} parent=11 // pred_check
          %p184 = pneg %p106
        $region22: #{tpu_custom_call.1} parent=11 // pred_check_branch
          %186 = sbr.rel (%p184) target = $region24
        $region23: #{tpu_custom_call.1} parent=11 // pred_region
          _
        $region24: #{tpu_custom_call.1} parent=11 // pred_fallthru
          _
        // Predicated region
        $region25: #{tpu_custom_call.1} parent=11 // pred_check
          %p187 = pneg %p127
        $region26: #{tpu_custom_call.1} parent=11 // pred_check_branch
          %189 = sbr.rel (%p187) target = $region28
        $region27: #{tpu_custom_call.1} parent=11 // pred_region
          _
        $region28: #{tpu_custom_call.1} parent=11 // pred_fallthru
          _
      $region12: #{tpu_custom_call.1} parent=5 // pred_fallthru
        _
      %p190 = scmp.lt.s32.totalorder %s17, 3
      // Predicated region
      $region29: #{tpu_custom_call.1} parent=5 // pred_check
        %p191 = pneg %p190
      $region30: #{tpu_custom_call.1} parent=5 // pred_check_branch
        %193 = sbr.rel (%p191) target = $region32
      $region31: #{tpu_custom_call.1} parent=5 // pred_region
        // Predicated region
        $region33: #{tpu_custom_call.1} parent=31 // pred_check
          %p194 = pneg %p37
        $region34: #{tpu_custom_call.1} parent=31 // pred_check_branch
          %196 = sbr.rel (%p194) target = $region36
        $region35: #{tpu_custom_call.1} parent=31 // pred_region
          %s197 = sand.u32 %s27, 1
          %s198 = scalar_lea.sflag [#allocation4], %s197
          %s199 = sand.u32 %s27, 1
          %s200 = smul.addr %s199, 128
          %s201 = scalar_lea.vmem [#allocation3], %s200
          %s202 = smul.u32 16, %s17
          %s203 = ssub.s32 38, %s202
          %p204 = scmp.lt.s32.totalorder %s203, 16
          %s205 = scalar_select %p204, %s203, 16
          %s206 = smul.u32 128, %s205
          %s208 = ssub.s32 2048, %s206
          %209 = vsyncadd %s198, %s208
          %p210 = scmp.ne.s32.totalorder 0, %s206
          %s211 = smul.addr %s202, 128
          %s212 = scalar_lea.hbm %s0, %s211
          %s213 = smul.u32 8, %s205
          %s214 = sshll.u32 %s201, 4
          %s215 = int_to_ptr.vmem [resolvable:$true] %s214
          %s216 = sshll.u32 %s213, 4
          %220 = dma.hbm_to_vmem [thread:$0]  (%p210), %s212, %s216, %s215, %s198, 128, 128, 8
        $region36: #{tpu_custom_call.1} parent=31 // pred_fallthru
          _
      $region32: #{tpu_custom_call.1} parent=5 // pred_fallthru
        _
      %p221 = scmp.le.s32.totalorder 1, %s17
      %p222 = scmp.lt.s32.totalorder %s17, 4
      %p223 = pnand %p221, %p222
      %p224 = pneg %p223
      // Predicated region
      $region37: #{tpu_custom_call.1} parent=5 // pred_check
        _
      $region38: #{tpu_custom_call.1} parent=5 // pred_check_branch
        %226 = sbr.rel (%p223) target = $region40
      $region39: #{tpu_custom_call.1} parent=5 // pred_region
        %s227 = ssub.s32 %s17, 1
        %s228 = sand.u32 %s30, 1
        %s229 = scalar_lea.sflag [#allocation4], %s228
        %s230 = sand.u32 %s30, 1
        %s231 = smul.addr %s230, 128
        %s232 = scalar_lea.vmem [#allocation3], %s231
        // Predicated region
        $region41: #{tpu_custom_call.1} parent=39 // pred_check
          %p233 = pneg %p43
        $region42: #{tpu_custom_call.1} parent=39 // pred_check_branch
          %235 = sbr.rel (%p233) target = $region44
        $region43: #{tpu_custom_call.1} parent=39 // pred_region
          %236 = dma.done %s229, 2048
        $region44: #{tpu_custom_call.1} parent=39 // pred_fallthru
          _
        // Predicated region
        $region45: #{tpu_custom_call.1} parent=39 // pred_check
          %p237 = pneg %p64
        $region46: #{tpu_custom_call.1} parent=39 // pred_check_branch
          %239 = sbr.rel (%p237) target = $region48
        $region47: #{tpu_custom_call.1} parent=39 // pred_region
          %240 = dma.done [#allocation6], 4096
        $region48: #{tpu_custom_call.1} parent=39 // pred_fallthru
          _
        %s241 = sand.u32 %s30, 1
        %s242 = scalar_lea.sflag [#allocation4], %s241
        %s243 = sand.u32 %s30, 1
        %s244 = smul.addr %s243, 128
        %s245 = scalar_lea.vmem [#allocation3], %s244
        %p246 = pneg %p43
        %p247 = pneg %p40
        %p248 = pneg %p64
        %p249 = pneg %p61
        %p250 = pneg %p85
        %p251 = pneg %p82
        %p252 = pneg %p106
        %p253 = pneg %p103
        %p254 = pneg %p127
        %p255 = pneg %p124
        %p256 = pneg %p153
        %p257 = pneg %p150
        %s258 = sand.u32 %s140, 1
        %s259 = sand.u32 %s140, 1
        %s260 = smul.addr %s259, 128
        %s261 = scalar_lea.vmem [#allocation7], %s260
        %s262 = smul.u32 16, %s22
        %s263 = ssub.s32 38, %s262
        %p264 = scmp.lt.s32.totalorder %s263, 16
        %s265 = scalar_select %p264, %s263, 16
        %s266 = smul.u32 128, %s265
        %s267 = smul.u32 16, %s22
        %s268 = ssub.s32 38, %s267
        %p269 = scmp.lt.s32.totalorder %s268, 16
        %s270 = scalar_select %p269, %s268, 16
        %s271 = smul.u32 128, %s270
        %v272 = vld [vmem:[%s232] sm:$0xff]
        %v273 = vld [vmem:[%s232 + $0x8] sm:$0xff]
        %v274 = vld [vmem:[%s232 + $0x10] sm:$0xff]
        %v275 = vld [vmem:[%s232 + $0x18] sm:$0xff]
        %v276 = vld [vmem:[%s232 + $0x20] sm:$0xff]
        %v277 = vld [vmem:[%s232 + $0x28] sm:$0xff]
        %v278 = vld [vmem:[%s232 + $0x30] sm:$0xff]
        %v279 = vld [vmem:[%s232 + $0x38] sm:$0xff]
        %v280 = vld [vmem:[%s232 + $0x40] sm:$0xff]
        %v281 = vld [vmem:[%s232 + $0x48] sm:$0xff]
        %v282 = vld [vmem:[%s232 + $0x50] sm:$0xff]
        %v283 = vld [vmem:[%s232 + $0x58] sm:$0xff]
        %v284 = vld [vmem:[%s232 + $0x60] sm:$0xff]
        %v285 = vld [vmem:[%s232 + $0x68] sm:$0xff]
        %v286 = vld [vmem:[%s232 + $0x70] sm:$0xff]
        %v287 = vld [vmem:[%s232 + $0x78] sm:$0xff]
        %v288 = vld [vmem:[#allocation5] sm:$0xff]
        %v289 = vld [vmem:[#allocation5 + $0x8] sm:$0xff]
        %v290 = vld [vmem:[#allocation5 + $0x10] sm:$0xff]
        %v291 = vld [vmem:[#allocation5 + $0x18] sm:$0xff]
        %v292 = vld [vmem:[#allocation5 + $0x20] sm:$0xff]
        %v293 = vld [vmem:[#allocation5 + $0x28] sm:$0xff]
        %v294 = vld [vmem:[#allocation5 + $0x30] sm:$0xff]
        %v295 = vld [vmem:[#allocation5 + $0x38] sm:$0xff]
        %v296 = vld [vmem:[#allocation5 + $0x40] sm:$0xff]
        %v297 = vld [vmem:[#allocation5 + $0x48] sm:$0xff]
        %v298 = vld [vmem:[#allocation5 + $0x50] sm:$0xff]
        %v299 = vld [vmem:[#allocation5 + $0x58] sm:$0xff]
        %v300 = vld [vmem:[#allocation5 + $0x60] sm:$0xff]
        %v301 = vld [vmem:[#allocation5 + $0x68] sm:$0xff]
        %v302 = vld [vmem:[#allocation5 + $0x70] sm:$0xff]
        %v303 = vld [vmem:[#allocation5 + $0x78] sm:$0xff]
        %v304 = vld [vmem:[#allocation5 + $0x80] sm:$0xff]
        %v305 = vld [vmem:[#allocation5 + $0x88] sm:$0xff]
        %v306 = vld [vmem:[#allocation5 + $0x90] sm:$0xff]
        %v307 = vld [vmem:[#allocation5 + $0x98] sm:$0xff]
        %v308 = vld [vmem:[#allocation5 + $0xa0] sm:$0xff]
        %v309 = vld [vmem:[#allocation5 + $0xa8] sm:$0xff]
        %v310 = vld [vmem:[#allocation5 + $0xb0] sm:$0xff]
        %v311 = vld [vmem:[#allocation5 + $0xb8] sm:$0xff]
        %v312 = vld [vmem:[#allocation5 + $0xc0] sm:$0xff]
        %v313 = vld [vmem:[#allocation5 + $0xc8] sm:$0xff]
        %v314 = vld [vmem:[#allocation5 + $0xd0] sm:$0xff]
        %v315 = vld [vmem:[#allocation5 + $0xd8] sm:$0xff]
        %v316 = vld [vmem:[#allocation5 + $0xe0] sm:$0xff]
        %v317 = vld [vmem:[#allocation5 + $0xe8] sm:$0xff]
        %v318 = vld [vmem:[#allocation5 + $0xf0] sm:$0xff]
        %v319 = vld [vmem:[#allocation5 + $0xf8] sm:$0xff]
        %v320 = vld [vmem:[%s2] sm:$0x3]
        %v322 = vlaneseq
        %v323 = vshrl.u32 %v322, 7
        %v324 = vsub.s32 0, %v323
        %v325 = vrot.slane %v320, %v324
        %v326 = vlaneseq
        %v327 = vshrl.u32 %v326, 7
        %v328 = vsub.s32 1, %v327
        %v329 = vrot.slane %v320, %v328
        %332 = vmatprep.subr.mxu0 %v289
        %333 = vmatpush1.msra.mxu0 %v288
        %334 = vmatprep.subr.mxu0 %v291
        %335 = vmatpush1.msra.mxu0 %v290
        %336 = vmatprep.subr.mxu0 %v293
        %337 = vmatpush1.msra.mxu0 %v292
        %338 = vmatprep.subr.mxu0 %v295
        %339 = vmatpush1.msra.mxu0 %v294
        %340 = vmatprep.subr.mxu0 %v297
        %341 = vmatpush1.msra.mxu0 %v296
        %342 = vmatprep.subr.mxu0 %v299
        %343 = vmatpush1.msra.mxu0 %v298
        %344 = vmatprep.subr.mxu0 %v301
        %345 = vmatpush1.msra.mxu0 %v300
        %346 = vmatprep.subr.mxu0 %v303
        %347 = vmatpush1.msra.mxu0 %v302
        %348 = vmatprep.subr.mxu0 %v305
        %349 = vmatpush1.msra.mxu0 %v304
        %350 = vmatprep.subr.mxu0 %v307
        %351 = vmatpush1.msra.mxu0 %v306
        %352 = vmatprep.subr.mxu0 %v309
        %353 = vmatpush1.msra.mxu0 %v308
        %354 = vmatprep.subr.mxu0 %v311
        %355 = vmatpush1.msra.mxu0 %v310
        %356 = vmatprep.subr.mxu0 %v313
        %357 = vmatpush1.msra.mxu0 %v312
        %358 = vmatprep.subr.mxu0 %v315
        %359 = vmatpush1.msra.mxu0 %v314
        %360 = vmatprep.subr.mxu0 %v317
        %361 = vmatpush1.msra.mxu0 %v316
        %362 = vmatprep.subr.mxu0 %v319
        %363 = vmatpush1.msra.mxu0 %v318
        %364 = vmatprep.subr.mxu0 0.0
        %365 = vmatpush1.msra.mxu0 0.0
        %366 = vmatprep.subr.mxu0 0.0
        %367 = vmatpush1.msra.mxu0 0.0
        %368 = vmatprep.subr.mxu0 0.0
        %369 = vmatpush1.msra.mxu0 0.0
        %370 = vmatprep.subr.mxu0 0.0
        %371 = vmatpush1.msra.mxu0 0.0
        %372 = vmatprep.subr.mxu0 0.0
        %373 = vmatpush1.msra.mxu0 0.0
        %374 = vmatprep.subr.mxu0 0.0
        %375 = vmatpush1.msra.mxu0 0.0
        %376 = vmatprep.subr.mxu0 0.0
        %377 = vmatpush1.msra.mxu0 0.0
        %378 = vmatprep.subr.mxu0 0.0
        %379 = vmatpush1.msra.mxu0 0.0
        %380 = vmatprep.subr.mxu0 0.0
        %381 = vmatpush1.msra.mxu0 0.0
        %382 = vmatprep.subr.mxu0 0.0
        %383 = vmatpush1.msra.mxu0 0.0
        %384 = vmatprep.subr.mxu0 0.0
        %385 = vmatpush1.msra.mxu0 0.0
        %386 = vmatprep.subr.mxu0 0.0
        %387 = vmatpush1.msra.mxu0 0.0
        %388 = vmatprep.subr.mxu0 0.0
        %389 = vmatpush1.msra.mxu0 0.0
        %390 = vmatprep.subr.mxu0 0.0
        %391 = vmatpush1.msra.mxu0 0.0
        %392 = vmatprep.subr.mxu0 0.0
        %393 = vmatpush1.msra.mxu0 0.0
        %394 = vmatprep.subr.mxu0 0.0
        %395 = vmatpush1.msra.mxu0 0.0
        %396 = vmatprep.mubr.f32.mxu0 0.0
        %397 = vmatmul.mubr.f32.gmra.mrb[0].mxu0 %v272
        %v398 = vpop.f32.mrb[0].mxu0
        %v399 = vadd.f32 %v325, %v398
        %v400 = vpop.f32.mrb[0].mxu0
        %v401 = vadd.f32 %v329, %v400
        %402 = vmatprep.mubr.f32.mxu0 0.0
        %403 = vmatmul.mubr.f32.gmra.mrb[0].mxu0 %v273
        %v404 = vpop.f32.mrb[0].mxu0
        %v405 = vadd.f32 %v325, %v404
        %v406 = vpop.f32.mrb[0].mxu0
        %v407 = vadd.f32 %v329, %v406
        %408 = vmatprep.mubr.f32.mxu0 0.0
        %409 = vmatmul.mubr.f32.gmra.mrb[0].mxu0 %v274
        %v410 = vpop.f32.mrb[0].mxu0
        %v411 = vadd.f32 %v325, %v410
        %v412 = vpop.f32.mrb[0].mxu0
        %v413 = vadd.f32 %v329, %v412
        %414 = vmatprep.mubr.f32.mxu0 0.0
        %415 = vmatmul.mubr.f32.gmra.mrb[0].mxu0 %v275
        %v416 = vpop.f32.mrb[0].mxu0
        %v417 = vadd.f32 %v325, %v416
        %v418 = vpop.f32.mrb[0].mxu0
        %v419 = vadd.f32 %v329, %v418
        %420 = vmatprep.mubr.f32.mxu0 0.0
        %421 = vmatmul.mubr.f32.gmra.mrb[0].mxu0 %v276
        %v422 = vpop.f32.mrb[0].mxu0
        %v423 = vadd.f32 %v325, %v422
        %v424 = vpop.f32.mrb[0].mxu0
        %v425 = vadd.f32 %v329, %v424
        %426 = vmatprep.mubr.f32.mxu0 0.0
        %427 = vmatmul.mubr.f32.gmra.mrb[0].mxu0 %v277
        %v428 = vpop.f32.mrb[0].mxu0
        %v429 = vadd.f32 %v325, %v428
        %v430 = vpop.f32.mrb[0].mxu0
        %v431 = vadd.f32 %v329, %v430
        %432 = vmatprep.mubr.f32.mxu0 0.0
        %433 = vmatmul.mubr.f32.gmra.mrb[0].mxu0 %v278
        %v434 = vpop.f32.mrb[0].mxu0
        %v435 = vadd.f32 %v325, %v434
        %v436 = vpop.f32.mrb[0].mxu0
        %v437 = vadd.f32 %v329, %v436
        %438 = vmatprep.mubr.f32.mxu0 0.0
        %439 = vmatmul.mubr.f32.gmra.mrb[0].mxu0 %v279
        %v440 = vpop.f32.mrb[0].mxu0
        %v441 = vadd.f32 %v325, %v440
        %v442 = vpop.f32.mrb[0].mxu0
        %v443 = vadd.f32 %v329, %v442
        %444 = vmatprep.mubr.f32.mxu0 0.0
        %445 = vmatmul.mubr.f32.gmra.mrb[0].mxu0 %v280
        %v446 = vpop.f32.mrb[0].mxu0
        %v447 = vadd.f32 %v325, %v446
        %v448 = vpop.f32.mrb[0].mxu0
        %v449 = vadd.f32 %v329, %v448
        %450 = vmatprep.mubr.f32.mxu0 0.0
        %451 = vmatmul.mubr.f32.gmra.mrb[0].mxu0 %v281
        %v452 = vpop.f32.mrb[0].mxu0
        %v453 = vadd.f32 %v325, %v452
        %v454 = vpop.f32.mrb[0].mxu0
        %v455 = vadd.f32 %v329, %v454
        %456 = vmatprep.mubr.f32.mxu0 0.0
        %457 = vmatmul.mubr.f32.gmra.mrb[0].mxu0 %v282
        %v458 = vpop.f32.mrb[0].mxu0
        %v459 = vadd.f32 %v325, %v458
        %v460 = vpop.f32.mrb[0].mxu0
        %v461 = vadd.f32 %v329, %v460
        %462 = vmatprep.mubr.f32.mxu0 0.0
        %463 = vmatmul.mubr.f32.gmra.mrb[0].mxu0 %v283
        %v464 = vpop.f32.mrb[0].mxu0
        %v465 = vadd.f32 %v325, %v464
        %v466 = vpop.f32.mrb[0].mxu0
        %v467 = vadd.f32 %v329, %v466
        %468 = vmatprep.mubr.f32.mxu0 0.0
        %469 = vmatmul.mubr.f32.gmra.mrb[0].mxu0 %v284
        %v470 = vpop.f32.mrb[0].mxu0
        %v471 = vadd.f32 %v325, %v470
        %v472 = vpop.f32.mrb[0].mxu0
        %v473 = vadd.f32 %v329, %v472
        %474 = vmatprep.mubr.f32.mxu0 0.0
        %475 = vmatmul.mubr.f32.gmra.mrb[0].mxu0 %v285
        %v476 = vpop.f32.mrb[0].mxu0
        %v477 = vadd.f32 %v325, %v476
        %v478 = vpop.f32.mrb[0].mxu0
        %v479 = vadd.f32 %v329, %v478
        %480 = vmatprep.mubr.f32.mxu0 0.0
        %481 = vmatmul.mubr.f32.gmra.mrb[0].mxu0 %v286
        %v482 = vpop.f32.mrb[0].mxu0
        %v483 = vadd.f32 %v325, %v482
        %v484 = vpop.f32.mrb[0].mxu0
        %v485 = vadd.f32 %v329, %v484
        %486 = vmatprep.mubr.f32.mxu0 0.0
        %487 = vmatmul.mubr.f32.gmra.mrb[0].mxu0 %v287
        %v488 = vpop.f32.mrb[0].mxu0
        %v489 = vadd.f32 %v325, %v488
        %v490 = vpop.f32.mrb[0].mxu0
        %v491 = vadd.f32 %v329, %v490
        %492 = vdwg.mxu0
        %v493 = vtanh.pop %v399
        %v494 = vtanh.pop %v405
        %v495 = vtanh.pop %v411
        %v496 = vtanh.pop %v417
        %v497 = vtanh.pop %v423
        %v498 = vtanh.pop %v429
        %v499 = vtanh.pop %v435
        %v500 = vtanh.pop %v441
        %v501 = vtanh.pop %v447
        %v502 = vtanh.pop %v453
        %v503 = vtanh.pop %v459
        %v504 = vtanh.pop %v465
        %v505 = vtanh.pop %v471
        %v506 = vtanh.pop %v477
        %v507 = vtanh.pop %v483
        %v508 = vtanh.pop %v489
        %v509 = vmul.f32 %v401, 0.5
        %v510 = vmul.f32 %v407, 0.5
        %v511 = vmul.f32 %v413, 0.5
        %v512 = vmul.f32 %v419, 0.5
        %v513 = vmul.f32 %v425, 0.5
        %v514 = vmul.f32 %v431, 0.5
        %v515 = vmul.f32 %v437, 0.5
        %v516 = vmul.f32 %v443, 0.5
        %v517 = vmul.f32 %v449, 0.5
        %v518 = vmul.f32 %v455, 0.5
        %v519 = vmul.f32 %v461, 0.5
        %v520 = vmul.f32 %v467, 0.5
        %v521 = vmul.f32 %v473, 0.5
        %v522 = vmul.f32 %v479, 0.5
        %v523 = vmul.f32 %v485, 0.5
        %v524 = vmul.f32 %v491, 0.5
        %v525 = vtanh.pop %v509
        %v526 = vtanh.pop %v510
        %v527 = vtanh.pop %v511
        %v528 = vtanh.pop %v512
        %v529 = vtanh.pop %v513
        %v530 = vtanh.pop %v514
        %v531 = vtanh.pop %v515
        %v532 = vtanh.pop %v516
        %v533 = vtanh.pop %v517
        %v534 = vtanh.pop %v518
        %v535 = vtanh.pop %v519
        %v536 = vtanh.pop %v520
        %v537 = vtanh.pop %v521
        %v538 = vtanh.pop %v522
        %v539 = vtanh.pop %v523
        %v540 = vtanh.pop %v524
        %v541 = vadd.f32 %v525, 1.0
        %v542 = vadd.f32 %v526, 1.0
        %v543 = vadd.f32 %v527, 1.0
        %v544 = vadd.f32 %v528, 1.0
        %v545 = vadd.f32 %v529, 1.0
        %v546 = vadd.f32 %v530, 1.0
        %v547 = vadd.f32 %v531, 1.0
        %v548 = vadd.f32 %v532, 1.0
        %v549 = vadd.f32 %v533, 1.0
        %v550 = vadd.f32 %v534, 1.0
        %v551 = vadd.f32 %v535, 1.0
        %v552 = vadd.f32 %v536, 1.0
        %v553 = vadd.f32 %v537, 1.0
        %v554 = vadd.f32 %v538, 1.0
        %v555 = vadd.f32 %v539, 1.0
        %v556 = vadd.f32 %v540, 1.0
        %v557 = vmul.f32 %v541, 0.5
        %v558 = vmul.f32 %v542, 0.5
        %v559 = vmul.f32 %v543, 0.5
        %v560 = vmul.f32 %v544, 0.5
        %v561 = vmul.f32 %v545, 0.5
        %v562 = vmul.f32 %v546, 0.5
        %v563 = vmul.f32 %v547, 0.5
        %v564 = vmul.f32 %v548, 0.5
        %v565 = vmul.f32 %v549, 0.5
        %v566 = vmul.f32 %v550, 0.5
        %v567 = vmul.f32 %v551, 0.5
        %v568 = vmul.f32 %v552, 0.5
        %v569 = vmul.f32 %v553, 0.5
        %v570 = vmul.f32 %v554, 0.5
        %v571 = vmul.f32 %v555, 0.5
        %v572 = vmul.f32 %v556, 0.5
        %v573 = vmul.f32 %v493, %v557
        %v574 = vmul.f32 %v494, %v558
        %v575 = vmul.f32 %v495, %v559
        %v576 = vmul.f32 %v496, %v560
        %v577 = vmul.f32 %v497, %v561
        %v578 = vmul.f32 %v498, %v562
        %v579 = vmul.f32 %v499, %v563
        %v580 = vmul.f32 %v500, %v564
        %v581 = vmul.f32 %v501, %v565
        %v582 = vmul.f32 %v502, %v566
        %v583 = vmul.f32 %v503, %v567
        %v584 = vmul.f32 %v504, %v568
        %v585 = vmul.f32 %v505, %v569
        %v586 = vmul.f32 %v506, %v570
        %v587 = vmul.f32 %v507, %v571
        %v588 = vmul.f32 %v508, %v572
        %v589 = vld [vmem:[#allocation2] sm:$0x1]
        %v590 = vld [vmem:[%s3] sm:$0x1]
        %v592 = vlaneseq
        %v593 = vshrl.u32 %v592, 7
        %v594 = vsub.s32 0, %v593
        %v595 = vrot.slane %v590, %v594
        %v597 = vmul.f32 %v573, %v595
        %v598 = vmul.f32 %v574, %v595
        %v599 = vmul.f32 %v575, %v595
        %v600 = vmul.f32 %v576, %v595
        %v601 = vmul.f32 %v577, %v595
        %v602 = vmul.f32 %v578, %v595
        %v603 = vmul.f32 %v579, %v595
        %v604 = vmul.f32 %v580, %v595
        %v605 = vmul.f32 %v581, %v595
        %v606 = vmul.f32 %v582, %v595
        %v607 = vmul.f32 %v583, %v595
        %v608 = vmul.f32 %v584, %v595
        %v609 = vmul.f32 %v585, %v595
        %v610 = vmul.f32 %v586, %v595
        %v611 = vmul.f32 %v587, %v595
        %v612 = vmul.f32 %v588, %v595
        %613 = vadd.xlane.f32.xlu0 %v597
        %v614 = vpop.xlane.xlu0 %613
        %615 = vadd.xlane.f32.xlu0 %v598
        %v616 = vpop.xlane.xlu0 %615
        %617 = vadd.xlane.f32.xlu0 %v599
        %v618 = vpop.xlane.xlu0 %617
        %619 = vadd.xlane.f32.xlu0 %v600
        %v620 = vpop.xlane.xlu0 %619
        %621 = vadd.xlane.f32.xlu0 %v601
        %v622 = vpop.xlane.xlu0 %621
        %623 = vadd.xlane.f32.xlu0 %v602
        %v624 = vpop.xlane.xlu0 %623
        %625 = vadd.xlane.f32.xlu0 %v603
        %v626 = vpop.xlane.xlu0 %625
        %627 = vadd.xlane.f32.xlu0 %v604
        %v628 = vpop.xlane.xlu0 %627
        %629 = vadd.xlane.f32.xlu0 %v605
        %v630 = vpop.xlane.xlu0 %629
        %631 = vadd.xlane.f32.xlu0 %v606
        %v632 = vpop.xlane.xlu0 %631
        %633 = vadd.xlane.f32.xlu0 %v607
        %v634 = vpop.xlane.xlu0 %633
        %635 = vadd.xlane.f32.xlu0 %v608
        %v636 = vpop.xlane.xlu0 %635
        %637 = vadd.xlane.f32.xlu0 %v609
        %v638 = vpop.xlane.xlu0 %637
        %639 = vadd.xlane.f32.xlu0 %v610
        %v640 = vpop.xlane.xlu0 %639
        %641 = vadd.xlane.f32.xlu0 %v611
        %v642 = vpop.xlane.xlu0 %641
        %643 = vadd.xlane.f32.xlu0 %v612
        %v644 = vpop.xlane.xlu0 %643
        %v646 = vlaneseq
        %v647 = vshrl.u32 %v646, 7
        %v648 = vsub.s32 0, %v647
        %v649 = vrot.slane %v589, %v648
        %v651 = vadd.f32 %v614, %v649
        %v652 = vadd.f32 %v616, %v649
        %v653 = vadd.f32 %v618, %v649
        %v654 = vadd.f32 %v620, %v649
        %v655 = vadd.f32 %v622, %v649
        %v656 = vadd.f32 %v624, %v649
        %v657 = vadd.f32 %v626, %v649
        %v658 = vadd.f32 %v628, %v649
        %v659 = vadd.f32 %v630, %v649
        %v660 = vadd.f32 %v632, %v649
        %v661 = vadd.f32 %v634, %v649
        %v662 = vadd.f32 %v636, %v649
        %v663 = vadd.f32 %v638, %v649
        %v664 = vadd.f32 %v640, %v649
        %v665 = vadd.f32 %v642, %v649
        %v666 = vadd.f32 %v644, %v649
        %vm667 = vcmask 7168
        %668 = vst.msk [vmem:[%s261] sm:$0xff] %vm667, %v651
        %669 = vst.msk [vmem:[%s261 + $0x8] sm:$0xff] %vm667, %v652
        %670 = vst.msk [vmem:[%s261 + $0x10] sm:$0xff] %vm667, %v653
        %671 = vst.msk [vmem:[%s261 + $0x18] sm:$0xff] %vm667, %v654
        %672 = vst.msk [vmem:[%s261 + $0x20] sm:$0xff] %vm667, %v655
        %673 = vst.msk [vmem:[%s261 + $0x28] sm:$0xff] %vm667, %v656
        %674 = vst.msk [vmem:[%s261 + $0x30] sm:$0xff] %vm667, %v657
        %675 = vst.msk [vmem:[%s261 + $0x38] sm:$0xff] %vm667, %v658
        %676 = vst.msk [vmem:[%s261 + $0x40] sm:$0xff] %vm667, %v659
        %677 = vst.msk [vmem:[%s261 + $0x48] sm:$0xff] %vm667, %v660
        %678 = vst.msk [vmem:[%s261 + $0x50] sm:$0xff] %vm667, %v661
        %679 = vst.msk [vmem:[%s261 + $0x58] sm:$0xff] %vm667, %v662
        %680 = vst.msk [vmem:[%s261 + $0x60] sm:$0xff] %vm667, %v663
        %681 = vst.msk [vmem:[%s261 + $0x68] sm:$0xff] %vm667, %v664
        %682 = vst.msk [vmem:[%s261 + $0x70] sm:$0xff] %vm667, %v665
        %683 = vst.msk [vmem:[%s261 + $0x78] sm:$0xff] %vm667, %v666
        %s684 = sand.u32 %s140, 1
        %s685 = sand.u32 %s140, 1
        %s686 = smul.addr %s685, 128
        %s687 = scalar_lea.vmem [#allocation7], %s686
        // Predicated region
        $region49: #{tpu_custom_call.1} parent=39 // pred_check
          %p688 = pneg %p150
        $region50: #{tpu_custom_call.1} parent=39 // pred_check_branch
          %690 = sbr.rel (%p688) target = $region52
        $region51: #{tpu_custom_call.1} parent=39 // pred_region
          %s691 = smul.u32 16, %s22
          %s692 = ssub.s32 38, %s691
          %p693 = scmp.lt.s32.totalorder %s692, 16
          %s694 = scalar_select %p693, %s692, 16
          %s695 = smul.u32 128, %s694
          %p696 = scmp.ne.s32.totalorder 0, %s695
          %s697 = smul.addr %s691, 8
          %s698 = scalar_lea.vmem %s5, %s697
          // Predicated region
          $region53: #{tpu_custom_call.1} parent=51 // pred_check
            %p699 = pneg %p696
          $region54: #{tpu_custom_call.1} parent=51 // pred_check_branch
            %701 = sbr.rel (%p699) target = $region56
          $region55: #{tpu_custom_call.1} parent=51 // pred_region
            // Predicated region
            $region57: #{tpu_custom_call.1} parent=55 // pred_check
              _
            $region58: #{tpu_custom_call.1} parent=55 // pred_check_branch
              %703 = sbr.rel (0) target = $region60
            $region59: #{tpu_custom_call.1} parent=55 // pred_region
              // Predicated region
              $region79: #{tpu_custom_call.1} parent=59 // pred_check
                _
              $region80: #{tpu_custom_call.1} parent=59 // pred_check_branch
                %782 = sbr.rel (0) target = $region82
              $region81: #{tpu_custom_call.1} parent=59 // pred_region
                %s783 = sshrl.u32 %s694, 4
                // While loop
                $region83: #{tpu_custom_call.1} parent=81 // loop_pre_header
                  _
                $region84: #{tpu_custom_call.1} parent=81 // loop_header
                  %s785 = sphi 0, %s787
                  %p786 = scmp.ge.s32.totalorder %s785, %s783
                  %s790 = sphi 0, %s827
                  %s791 = sphi %s687, %s830
                  %s792 = sphi %s698, %s831
                $region85: #{tpu_custom_call.1} parent=81 // loop_header_branch
                  %789 = sbr.rel (%p786) target = $region89
                $region86: #{tpu_custom_call.1} parent=81 // loop_body
                  %v793 = vld [vmem:[%s791] sm:$0xff]
                  %794 = vst [vmem:[%s792] sm:$0xff] %v793
                  %v795 = vld [vmem:[%s791 + $0x8] sm:$0xff]
                  %796 = vst [vmem:[%s792 + $0x8] sm:$0xff] %v795
                  %v797 = vld [vmem:[%s791 + $0x10] sm:$0xff]
                  %798 = vst [vmem:[%s792 + $0x10] sm:$0xff] %v797
                  %v799 = vld [vmem:[%s791 + $0x18] sm:$0xff]
                  %800 = vst [vmem:[%s792 + $0x18] sm:$0xff] %v799
                  %v801 = vld [vmem:[%s791 + $0x20] sm:$0xff]
                  %802 = vst [vmem:[%s792 + $0x20] sm:$0xff] %v801
                  %v803 = vld [vmem:[%s791 + $0x28] sm:$0xff]
                  %804 = vst [vmem:[%s792 + $0x28] sm:$0xff] %v803
                  %v805 = vld [vmem:[%s791 + $0x30] sm:$0xff]
                  %806 = vst [vmem:[%s792 + $0x30] sm:$0xff] %v805
                  %v807 = vld [vmem:[%s791 + $0x38] sm:$0xff]
                  %808 = vst [vmem:[%s792 + $0x38] sm:$0xff] %v807
                  %v809 = vld [vmem:[%s791 + $0x40] sm:$0xff]
                  %810 = vst [vmem:[%s792 + $0x40] sm:$0xff] %v809
                  %v811 = vld [vmem:[%s791 + $0x48] sm:$0xff]
                  %812 = vst [vmem:[%s792 + $0x48] sm:$0xff] %v811
                  %v813 = vld [vmem:[%s791 + $0x50] sm:$0xff]
                  %814 = vst [vmem:[%s792 + $0x50] sm:$0xff] %v813
                  %v815 = vld [vmem:[%s791 + $0x58] sm:$0xff]
                  %816 = vst [vmem:[%s792 + $0x58] sm:$0xff] %v815
                  %v817 = vld [vmem:[%s791 + $0x60] sm:$0xff]
                  %818 = vst [vmem:[%s792 + $0x60] sm:$0xff] %v817
                  %v819 = vld [vmem:[%s791 + $0x68] sm:$0xff]
                  %820 = vst [vmem:[%s792 + $0x68] sm:$0xff] %v819
                  %v821 = vld [vmem:[%s791 + $0x70] sm:$0xff]
                  %822 = vst [vmem:[%s792 + $0x70] sm:$0xff] %v821
                  %v823 = vld [vmem:[%s791 + $0x78] sm:$0xff]
                  %824 = vst [vmem:[%s792 + $0x78] sm:$0xff] %v823
                  %s825 = sadd.s32 1, %s790
                  %p826 = scmp.ge.s32.totalorder %s825, %s783
                  %s827 = scalar_select %p826, 0, %s825
                  %s828 = smul.u32 %s827, 128
                  %s829 = smul.u32 %s827, 128
                  %s830 = scalar_lea.vmem %s687, %s828 [#allocation7]
                  %s831 = scalar_lea.vmem %s698, %s829
                $region87: #{tpu_custom_call.1} parent=81 // loop_footer
                  %s787 = sadd.s32 %s785, 1
                $region88: #{tpu_custom_call.1} parent=81 // loop_footer_branch
                  %784 = sbr.rel target = $region84
                $region89: #{tpu_custom_call.1} parent=81 // loop_exit
                  _
                %s832 = sshrl.u32 %s694, 4
                %s833 = sand.u32 %s694, 15
                %s834 = smul.u32 %s832, 16
                %s835 = smul.u32 8, %s834
                %s836 = scalar_lea.vmem %s687, %s835 [#allocation7]
                %s837 = smul.u32 8, %s834
                %s838 = scalar_lea.vmem %s698, %s837
                // While loop
                $region90: #{tpu_custom_call.1} parent=81 // loop_pre_header
                  _
                $region91: #{tpu_custom_call.1} parent=81 // loop_header
                  %s840 = sphi 0, %s842
                  %p841 = scmp.ge.s32.totalorder %s840, %s833
                  %s845 = sphi 0, %s852
                  %s846 = sphi %s836, %s855
                  %s847 = sphi %s838, %s856
                $region92: #{tpu_custom_call.1} parent=81 // loop_header_branch
                  %844 = sbr.rel (%p841) target = $region96
                $region93: #{tpu_custom_call.1} parent=81 // loop_body
                  %v848 = vld [vmem:[%s846] sm:$0xff]
                  %849 = vst [vmem:[%s847] sm:$0xff] %v848
                  %s850 = sadd.s32 1, %s845
                  %p851 = scmp.ge.s32.totalorder %s850, %s833
                  %s852 = scalar_select %p851, 0, %s850
                  %s853 = smul.u32 %s852, 8
                  %s854 = smul.u32 %s852, 8
                  %s855 = scalar_lea.vmem %s836, %s853 [#allocation7]
                  %s856 = scalar_lea.vmem %s838, %s854
                $region94: #{tpu_custom_call.1} parent=81 // loop_footer
                  %s842 = sadd.s32 %s840, 1
                $region95: #{tpu_custom_call.1} parent=81 // loop_footer_branch
                  %839 = sbr.rel target = $region91
                $region96: #{tpu_custom_call.1} parent=81 // loop_exit
                  _
              $region82: #{tpu_custom_call.1} parent=59 // pred_fallthru
                _
              // Predicated region
              $region97: #{tpu_custom_call.1} parent=59 // pred_check
                _
              $region98: #{tpu_custom_call.1} parent=59 // pred_check_branch
                %858 = sbr.rel target = $region100
              $region99: #{tpu_custom_call.1} parent=59 // pred_region
                _
              $region100: #{tpu_custom_call.1} parent=59 // pred_fallthru
                _
            $region60: #{tpu_custom_call.1} parent=55 // pred_fallthru
              _
            // Predicated region
            $region61: #{tpu_custom_call.1} parent=55 // pred_check
              _
            $region62: #{tpu_custom_call.1} parent=55 // pred_check_branch
              %705 = sbr.rel target = $region64
            $region63: #{tpu_custom_call.1} parent=55 // pred_region
              %s707 = sshrl.u32 %s694, 4
              // While loop
              $region65: #{tpu_custom_call.1} parent=63 // loop_pre_header
                _
              $region66: #{tpu_custom_call.1} parent=63 // loop_header
                %s709 = sphi 0, %s711
                %p710 = scmp.ge.s32.totalorder %s709, %s707
                %s714 = sphi 0, %s751
                %s715 = sphi %s687, %s754
                %s716 = sphi %s698, %s755
              $region67: #{tpu_custom_call.1} parent=63 // loop_header_branch
                %713 = sbr.rel (%p710) target = $region71
              $region68: #{tpu_custom_call.1} parent=63 // loop_body
                %v717 = vld [vmem:[%s715] sm:$0xff]
                %718 = vst [vmem:[%s716] sm:$0xff] %v717
                %v719 = vld [vmem:[%s715 + $0x8] sm:$0xff]
                %720 = vst [vmem:[%s716 + $0x8] sm:$0xff] %v719
                %v721 = vld [vmem:[%s715 + $0x10] sm:$0xff]
                %722 = vst [vmem:[%s716 + $0x10] sm:$0xff] %v721
                %v723 = vld [vmem:[%s715 + $0x18] sm:$0xff]
                %724 = vst [vmem:[%s716 + $0x18] sm:$0xff] %v723
                %v725 = vld [vmem:[%s715 + $0x20] sm:$0xff]
                %726 = vst [vmem:[%s716 + $0x20] sm:$0xff] %v725
                %v727 = vld [vmem:[%s715 + $0x28] sm:$0xff]
                %728 = vst [vmem:[%s716 + $0x28] sm:$0xff] %v727
                %v729 = vld [vmem:[%s715 + $0x30] sm:$0xff]
                %730 = vst [vmem:[%s716 + $0x30] sm:$0xff] %v729
                %v731 = vld [vmem:[%s715 + $0x38] sm:$0xff]
                %732 = vst [vmem:[%s716 + $0x38] sm:$0xff] %v731
                %v733 = vld [vmem:[%s715 + $0x40] sm:$0xff]
                %734 = vst [vmem:[%s716 + $0x40] sm:$0xff] %v733
                %v735 = vld [vmem:[%s715 + $0x48] sm:$0xff]
                %736 = vst [vmem:[%s716 + $0x48] sm:$0xff] %v735
                %v737 = vld [vmem:[%s715 + $0x50] sm:$0xff]
                %738 = vst [vmem:[%s716 + $0x50] sm:$0xff] %v737
                %v739 = vld [vmem:[%s715 + $0x58] sm:$0xff]
                %740 = vst [vmem:[%s716 + $0x58] sm:$0xff] %v739
                %v741 = vld [vmem:[%s715 + $0x60] sm:$0xff]
                %742 = vst [vmem:[%s716 + $0x60] sm:$0xff] %v741
                %v743 = vld [vmem:[%s715 + $0x68] sm:$0xff]
                %744 = vst [vmem:[%s716 + $0x68] sm:$0xff] %v743
                %v745 = vld [vmem:[%s715 + $0x70] sm:$0xff]
                %746 = vst [vmem:[%s716 + $0x70] sm:$0xff] %v745
                %v747 = vld [vmem:[%s715 + $0x78] sm:$0xff]
                %748 = vst [vmem:[%s716 + $0x78] sm:$0xff] %v747
                %s749 = sadd.s32 1, %s714
                %p750 = scmp.ge.s32.totalorder %s749, %s707
                %s751 = scalar_select %p750, 0, %s749
                %s752 = smul.u32 %s751, 128
                %s753 = smul.u32 %s751, 128
                %s754 = scalar_lea.vmem %s687, %s752 [#allocation7]
                %s755 = scalar_lea.vmem %s698, %s753
              $region69: #{tpu_custom_call.1} parent=63 // loop_footer
                %s711 = sadd.s32 %s709, 1
              $region70: #{tpu_custom_call.1} parent=63 // loop_footer_branch
                %708 = sbr.rel target = $region66
              $region71: #{tpu_custom_call.1} parent=63 // loop_exit
                _
              %s756 = sshrl.u32 %s694, 4
              %s757 = sand.u32 %s694, 15
              %s758 = smul.u32 %s756, 16
              %s759 = smul.u32 8, %s758
              %s760 = scalar_lea.vmem %s687, %s759 [#allocation7]
              %s761 = smul.u32 8, %s758
              %s762 = scalar_lea.vmem %s698, %s761
              // While loop
              $region72: #{tpu_custom_call.1} parent=63 // loop_pre_header
                _
              $region73: #{tpu_custom_call.1} parent=63 // loop_header
                %s764 = sphi 0, %s766
                %p765 = scmp.ge.s32.totalorder %s764, %s757
                %s769 = sphi 0, %s776
                %s770 = sphi %s760, %s779
                %s771 = sphi %s762, %s780
              $region74: #{tpu_custom_call.1} parent=63 // loop_header_branch
                %768 = sbr.rel (%p765) target = $region78
              $region75: #{tpu_custom_call.1} parent=63 // loop_body
                %v772 = vld [vmem:[%s770] sm:$0xff]
                %773 = vst [vmem:[%s771] sm:$0xff] %v772
                %s774 = sadd.s32 1, %s769
                %p775 = scmp.ge.s32.totalorder %s774, %s757
                %s776 = scalar_select %p775, 0, %s774
                %s777 = smul.u32 %s776, 8
                %s778 = smul.u32 %s776, 8
                %s779 = scalar_lea.vmem %s760, %s777 [#allocation7]
                %s780 = scalar_lea.vmem %s762, %s778
              $region76: #{tpu_custom_call.1} parent=63 // loop_footer
                %s766 = sadd.s32 %s764, 1
              $region77: #{tpu_custom_call.1} parent=63 // loop_footer_branch
                %763 = sbr.rel target = $region73
              $region78: #{tpu_custom_call.1} parent=63 // loop_exit
                _
            $region64: #{tpu_custom_call.1} parent=55 // pred_fallthru
              _
          $region56: #{tpu_custom_call.1} parent=51 // pred_fallthru
            _
          %859 = vnop
        $region52: #{tpu_custom_call.1} parent=39 // pred_fallthru
          _
      $region40: #{tpu_custom_call.1} parent=5 // pred_fallthru
        _
      %p860 = scmp.le.s32.totalorder 2, %s17
      // Predicated region
      $region101: #{tpu_custom_call.1} parent=5 // pred_check
        %p861 = pneg %p860
      $region102: #{tpu_custom_call.1} parent=5 // pred_check_branch
        %863 = sbr.rel (%p861) target = $region104
      $region103: #{tpu_custom_call.1} parent=5 // pred_region
        %s864 = ssub.s32 %s17, 2
        // Predicated region
        $region105: #{tpu_custom_call.1} parent=103 // pred_check
          %p865 = pneg %p156
        $region106: #{tpu_custom_call.1} parent=103 // pred_check_branch
          %867 = sbr.rel (%p865) target = $region108
        $region107: #{tpu_custom_call.1} parent=103 // pred_region
          %s868 = sand.u32 %s141, 1
          %s869 = sand.u32 %s141, 1
          %s870 = smul.addr %s869, 128
          %s871 = scalar_lea.vmem [#allocation7], %s870
        $region108: #{tpu_custom_call.1} parent=103 // pred_fallthru
          _
      $region104: #{tpu_custom_call.1} parent=5 // pred_fallthru
        _
    $region6: #{tpu_custom_call.1} parent=1 // loop_footer
      %s21 = sadd.s32 1, %s17
    $region7: #{tpu_custom_call.1} parent=1 // loop_footer_branch
      %16 = sbr.rel target = $region3
    $region8: #{tpu_custom_call.1} parent=1 // loop_exit
      _
    %872 = vsyncpa [#allocation4], 1
    %s873 = scalar_lea.sflag [#allocation4], 1
    %874 = vsyncpa %s873, 1
    %875 = vsyncpa [#allocation6], 1

</llo_original>
